<compile_context>
chip_gen: v7x
topology: tpu7x:2x2x1
jax: 0.10.0
libtpu: 0.0.40
codegen_flags: <defaults>
</compile_context>

<pallas_src>
import jax
import jax.numpy as jnp
import numpy as np
from jax.experimental import pallas as pl
from jax.experimental.pallas import tpu as pltpu

LN_EPS = 1e-5


def _layernorm(x, w, b):
    mu = jnp.mean(x, axis=-1, keepdims=True)
    var = jnp.mean((x - mu) ** 2, axis=-1, keepdims=True)
    return (x - mu) * jax.lax.rsqrt(var + LN_EPS) * w + b


def _vmem_limit_bytes():
    # Leave headroom below physical per-core VMEM (v5e/v6e: 128 MiB, v7x: 64 MiB).
    cap = 128 * 1024 * 1024
    try:
        cap = int(getattr(pltpu.get_tpu_info(), "vmem_capacity_bytes", cap))
    except Exception:
        pass
    return min((cap * 3) // 4, 96 * 1024 * 1024)


def _row_tile(n, target=256):
    # 256-row tiles match the 256-wide MXU on v6e/v7x.
    if n <= target:
        return n
    for t in (target, 128, 64, 32, 16, 8):
        if n % t == 0:
            return t
    return n   # TODO(synk): pad N for production shapes not divisible by 8.


# --------------------------- stage 1: LN1 + SSF + qkv -------------------------
def qkv_kernel(x_ref, n1w_ref, n1b_ref, s1_ref, sh1_ref,
               wqkv_ref, sq_ref, shq_ref, qkv_ref):
    x = x_ref[0].astype(jnp.float32)                       # (tn, C)
    xn = _layernorm(x, n1w_ref[0], n1b_ref[0])
    xn = xn * s1_ref[0] + sh1_ref[0]                       # ssf_ada(norm1(x))
    qkv = jnp.dot(xn.astype(jnp.bfloat16), wqkv_ref[...],
                  preferred_element_type=jnp.float32)      # fused (C, 3C) matmul
    qkv = qkv * sq_ref[0] + shq_ref[0]                     # SSF (q-scale pre-folded)
    qkv_ref[0] = qkv.astype(qkv_ref.dtype)                 # bf16 to HBM


# --------------------------- stage 2: flash attention -------------------------
def flash_attn_kernel(q_ref, k_ref, v_ref, o_ref, m_sc, l_sc, acc_sc):
    kv = pl.program_id(2)

    @pl.when(kv == 0)
    def _():
        m_sc[...] = jnp.full(m_sc.shape, -jnp.inf, jnp.float32)
        l_sc[...] = jnp.zeros(l_sc.shape, jnp.float32)
        acc_sc[...] = jnp.zeros(acc_sc.shape, jnp.float32)

    q = q_ref[0]                                           # (tq, hd) bf16, pre-scaled
    k = k_ref[0]                                           # (tk, hd) bf16
    v = v_ref[0]                                           # (tk, hd) bf16
    s = jax.lax.dot_general(q, k, (((1,), (1,)), ((), ())),
                            preferred_element_type=jnp.float32)   # (tq, tk)

    m_prev = m_sc[...]
    m_new = jnp.maximum(m_prev, s.max(axis=-1, keepdims=True))
    alpha = jnp.exp(m_prev - m_new)
    p = jnp.exp(s - m_new)
    l_sc[...] = alpha * l_sc[...] + p.sum(axis=-1, keepdims=True)
    acc_sc[...] = alpha * acc_sc[...] + jnp.dot(
        p.astype(jnp.bfloat16), v, preferred_element_type=jnp.float32)
    m_sc[...] = m_new

    @pl.when(kv == pl.num_programs(2) - 1)
    def _():
        o_ref[0] = (acc_sc[...] *
                    pl.reciprocal(l_sc[...], approx=True)).astype(o_ref.dtype)


# --------------------- stage 3: out-proj + residuals + MLP --------------------
def proj_mlp_kernel(x_ref, a_ref, pw_ref, pb_ref, sp_ref, shp_ref,
                    n2w_ref, n2b_ref, s1_ref, sh1_ref,
                    w1_ref, b1_ref, sm1_ref, shm1_ref,
                    w2_ref, b2_ref, sm2_ref, shm2_ref, o_ref):
    bf16 = jnp.bfloat16
    x = x_ref[0].astype(jnp.float32)                       # (tn, C)
    a = a_ref[0]                                           # (tn, C) bf16 attn heads

    proj = jnp.dot(a, pw_ref[...],
                   preferred_element_type=jnp.float32) + pb_ref[0]   # one K=C matmul
    proj = proj * sp_ref[0] + shp_ref[0]
    x = x + proj                                           # residual 1

    xn = _layernorm(x, n2w_ref[0], n2b_ref[0])
    xn = xn * s1_ref[0] + sh1_ref[0]                       # module reuses ssf_scale_1/shift_1
    h1 = jnp.dot(xn.astype(bf16), w1_ref[...],
                 preferred_element_type=jnp.float32) + b1_ref[0]
    h1 = h1 * sm1_ref[0] + shm1_ref[0]
    h1 = jax.nn.gelu(h1, approximate=False)                # exact (erf) GELU, f32
    h2 = jnp.dot(h1.astype(bf16), w2_ref[...],
                 preferred_element_type=jnp.float32) + b2_ref[0]
    h2 = h2 * sm2_ref[0] + shm2_ref[0]

    o_ref[0] = (x + h2).astype(o_ref.dtype)                # residual 2


# --------------------------------- wrapper ------------------------------------
def ssf_transformer_block(x, params, num_heads, *, row_tile=256,
                          single_buffer_weights=True):
    B, N, C = x.shape
    M = params["mlp_w1"].shape[1]
    H = num_heads
    assert C % H == 0
    hd = C // H
    bf16, f32 = jnp.bfloat16, jnp.float32

    tn = _row_tile(N, row_tile)
    nt = N // tn
    vmem_limit = _vmem_limit_bytes()

    # Fold 1/sqrt(hd) into the q columns of the qkv SSF affine:
    # (raw*s + sh)*scale == raw*(s*scale) + sh*scale.
    scale = 1.0 / (hd ** 0.5)
    s_qkv = jnp.concatenate(
        [params["ssf_scale_qkv"][:, :C] * scale, params["ssf_scale_qkv"][:, C:]], axis=1)
    sh_qkv = jnp.concatenate(
        [params["ssf_shift_qkv"][:, :C] * scale, params["ssf_shift_qkv"][:, C:]], axis=1)

    qkv_w = params["qkv_w"].astype(bf16)                   # fused (C, 3C)
    proj_w = params["proj_w"].astype(bf16)
    w1 = params["mlp_w1"].astype(bf16)
    w2 = params["mlp_w2"].astype(bf16)

    def row_spec(d):                                       # (1, d) shared row params
        return pl.BlockSpec((1, d), lambda *_: (0, 0))

    def weight_spec(r, c):                                 # constant across the grid
        if single_buffer_weights:
            return pl.BlockSpec((r, c), lambda *_: (0, 0),
                                pipeline_mode=pl.Buffered(1))
        return pl.BlockSpec((r, c), lambda *_: (0, 0))

    def cparams(sem):
        return pltpu.CompilerParams(dimension_semantics=sem,
                                    vmem_limit_bytes=vmem_limit)

    # -------- stage 1 --------
    qkv_cost = pl.CostEstimate(
        flops=2 * B * N * C * 3 * C,
        transcendentals=B * N,
        bytes_accessed=4 * B * N * C + 2 * C * 3 * C + 2 * B * N * 3 * C)
    qkv = pl.pallas_call(
        qkv_kernel,
        out_shape=jax.ShapeDtypeStruct((B, N, 3 * C), bf16),
        grid=(B, nt),
        in_specs=[
            pl.BlockSpec((1, tn, C), lambda b, i: (b, i, 0)),   # x
            row_spec(C), row_spec(C),                           # norm1 w/b
            row_spec(C), row_spec(C),                           # ssf_scale_1 / shift_1
            weight_spec(C, 3 * C),                              # fused qkv weight
            row_spec(3 * C), row_spec(3 * C),                   # qkv SSF (q-scaled)
        ],
        out_specs=pl.BlockSpec((1, tn, 3 * C), lambda b, i: (b, i, 0)),
        compiler_params=cparams(("parallel", "parallel")),
        cost_estimate=qkv_cost,
    )(x, params["norm1_w"], params["norm1_b"],
      params["ssf_scale_1"], params["ssf_shift_1"],
      qkv_w, s_qkv, sh_qkv)

    # Layout plumbing (XLA): split heads so hd is the full last dim per block.
    def to_heads(t):                                       # (B, N, C) -> (B*H, N, hd)
        return t.reshape(B, N, H, hd).transpose(0, 2, 1, 3).reshape(B * H, N, hd)

    q = to_heads(qkv[:, :, :C])
    k = to_heads(qkv[:, :, C:2 * C])
    v = to_heads(qkv[:, :, 2 * C:])

    # -------- stage 2 --------
    tq = tk = tn
    nq, nk = N // tq, N // tk
    attn_cost = pl.CostEstimate(
        flops=4 * B * H * N * N * hd,
        transcendentals=B * H * N * N,
        bytes_accessed=3 * 2 * B * N * C + 2 * B * N * C)
    attn = pl.pallas_call(
        flash_attn_kernel,
        out_shape=jax.ShapeDtypeStruct((B * H, N, hd), bf16),
        grid=(B * H, nq, nk),
        in_specs=[
            pl.BlockSpec((1, tq, hd), lambda g, i, j: (g, i, 0)),
            pl.BlockSpec((1, tk, hd), lambda g, i, j: (g, j, 0)),
            pl.BlockSpec((1, tk, hd), lambda g, i, j: (g, j, 0)),
        ],
        out_specs=pl.BlockSpec((1, tq, hd), lambda g, i, j: (g, i, 0)),
        scratch_shapes=[
            pltpu.VMEM((tq, 1), f32),      # running max
            pltpu.VMEM((tq, 1), f32),      # running denom
            pltpu.VMEM((tq, hd), f32),     # output accumulator
        ],
        compiler_params=cparams(("parallel", "parallel", "arbitrary")),
        cost_estimate=attn_cost,
    )(q, k, v)

    # (B*H, N, hd) -> (B, N, C): one lane-dense slab feeding the K=C projection.
    attn_cat = attn.reshape(B, H, N, hd).transpose(0, 2, 1, 3).reshape(B, N, C)

    # -------- stage 3 --------
    mlp_cost = pl.CostEstimate(
        flops=2 * B * N * (C * C + 2 * C * M),
        transcendentals=B * N * (M + 1),
        bytes_accessed=(4 * 2 * B * N * C + 2 * B * N * C
                        + 2 * (C * C + 2 * C * M)))
    out = pl.pallas_call(
        proj_mlp_kernel,
        out_shape=jax.ShapeDtypeStruct((B, N, C), x.dtype),
        grid=(B, nt),
        in_specs=[
            pl.BlockSpec((1, tn, C), lambda b, i: (b, i, 0)),   # x (residual)
            pl.BlockSpec((1, tn, C), lambda b, i: (b, i, 0)),   # attn heads (bf16)
            weight_spec(C, C), row_spec(C),                     # out projection
            row_spec(C), row_spec(C),                           # ssf proj
            row_spec(C), row_spec(C),                           # norm2
            row_spec(C), row_spec(C),                           # ssf_1 (reused by module)
            weight_spec(C, M), row_spec(M),                     # mlp linear1
            row_spec(M), row_spec(M),                           # ssf mlp1
            weight_spec(M, C), row_spec(C),                     # mlp linear2
            row_spec(C), row_spec(C),                           # ssf mlp2
        ],
        out_specs=pl.BlockSpec((1, tn, C), lambda b, i: (b, i, 0)),
        compiler_params=cparams(("parallel", "parallel")),
        cost_estimate=mlp_cost,
    )(x, attn_cat,
      proj_w, params["proj_b"],
      params["ssf_scale_proj"], params["ssf_shift_proj"],
      params["norm2_w"], params["norm2_b"],
      params["ssf_scale_1"], params["ssf_shift_1"],
      w1, params["mlp_b1"],
      params["ssf_scale_m1"], params["ssf_shift_m1"],
      w2, params["mlp_b2"],
      params["ssf_scale_m2"], params["ssf_shift_m2"])
    return out


# ----------------------------- pure-JAX reference ----------------------------
# Mirrors the kernel's precision policy (bf16 at the MXU boundary, f32
# accumulation / element-wise) so the comparison stays tight.
def reference(x, p, num_heads):
    B, N, C = x.shape
    hd = C // num_heads
    scale = 1.0 / (hd ** 0.5)
    bf16 = jnp.bfloat16

    xn = _layernorm(x, p["norm1_w"][0], p["norm1_b"][0])
    xn = xn * p["ssf_scale_1"][0] + p["ssf_shift_1"][0]
    qkv = jnp.dot(xn.astype(bf16), p["qkv_w"].astype(bf16),
                  preferred_element_type=jnp.float32)
    qkv = qkv * p["ssf_scale_qkv"][0] + p["ssf_shift_qkv"][0]
    q = (qkv[..., :C] * scale).astype(bf16).reshape(B, N, num_heads, hd)
    k = qkv[..., C:2 * C].astype(bf16).reshape(B, N, num_heads, hd)
    v = qkv[..., 2 * C:].astype(bf16).reshape(B, N, num_heads, hd)
    att = jnp.einsum("bxhd,byhd->bhxy", q, k,
                     preferred_element_type=jnp.float32)
    att = jax.nn.softmax(att, axis=-1)
    out = jnp.einsum("bhxy,byhd->bxhd", att.astype(bf16), v,
                     preferred_element_type=jnp.float32)
    out = out.reshape(B, N, C).astype(bf16)
    out = jnp.dot(out, p["proj_w"].astype(bf16),
                  preferred_element_type=jnp.float32) + p["proj_b"][0]
    out = out * p["ssf_scale_proj"][0] + p["ssf_shift_proj"][0]
    x = x + out

    xn = _layernorm(x, p["norm2_w"][0], p["norm2_b"][0])
    xn = xn * p["ssf_scale_1"][0] + p["ssf_shift_1"][0]
    h1 = jnp.dot(xn.astype(bf16), p["mlp_w1"].astype(bf16),
                 preferred_element_type=jnp.float32) + p["mlp_b1"][0]
    h1 = h1 * p["ssf_scale_m1"][0] + p["ssf_shift_m1"][0]
    h1 = jax.nn.gelu(h1, approximate=False)
    h2 = jnp.dot(h1.astype(bf16), p["mlp_w2"].astype(bf16),
                 preferred_element_type=jnp.float32) + p["mlp_b2"][0]
    h2 = h2 * p["ssf_scale_m2"][0] + p["ssf_shift_m2"][0]
    return x + h2


# --------------------------------- main --------------------------------------
if __name__ == "__main__":
    B, N, C, M, H = 2, 8, 32, 64, 4       # batch, seq, hidden, mlp_dim, heads

    key = jax.random.PRNGKey(0)
    ks = jax.random.split(key, 24)

    def nrm(k, shape, std=0.02, mean=0.0):
        return mean + std * jax.random.normal(k, shape, jnp.float32)

    params = {
        "norm1_w": jnp.ones((1, C), jnp.float32),
        "norm1_b": jnp.zeros((1, C), jnp.float32),
        "ssf_scale_1": nrm(ks[0], (1, C), mean=1.0),
        "ssf_shift_1": nrm(ks[1], (1, C)),
        "qkv_w": nrm(ks[2], (C, 3 * C)),           # (in, out), qkv_bias=False
        "ssf_scale_qkv": nrm(ks[3], (1, 3 * C), mean=1.0),
        "ssf_shift_qkv": nrm(ks[4], (1, 3 * C)),
        "proj_w": nrm(ks[5], (C, C)),
        "proj_b": nrm(ks[6], (1, C)),
        "ssf_scale_proj": nrm(ks[7], (1, C), mean=1.0),
        "ssf_shift_proj": nrm(ks[8], (1, C)),
        "norm2_w": jnp.ones((1, C), jnp.float32),
        "norm2_b": jnp.zeros((1, C), jnp.float32),
        "mlp_w1": nrm(ks[9], (C, M)),
        "mlp_b1": nrm(ks[10], (1, M)),
        "ssf_scale_m1": nrm(ks[11], (1, M), mean=1.0),
        "ssf_shift_m1": nrm(ks[12], (1, M)),
        "mlp_w2": nrm(ks[13], (M, C)),
        "mlp_b2": nrm(ks[14], (1, C)),
        "ssf_scale_m2": nrm(ks[15], (1, C), mean=1.0),
        "ssf_shift_m2": nrm(ks[16], (1, C)),
    }

    x = jax.random.normal(ks[17], (B, N, C), jnp.float32)

    try:
        out = jax.block_until_ready(ssf_transformer_block(x, params, num_heads=H))
    except Exception:
        # TODO(synk): pl.Buffered(1) single-buffered weights not supported on
        # this jax version -- fall back to default double-buffering.
        out = jax.block_until_ready(
            ssf_transformer_block(x, params, num_heads=H,
                                  single_buffer_weights=False))

    ref = jax.block_until_ready(reference(x, params, H))
    np.testing.assert_allclose(np.asarray(out), np.asarray(ref),
                               rtol=3e-3, atol=3e-3)
    print("KERNEL_OK")
</pallas_src>

<mosaic_0001>
module attributes {stable_mosaic.version = 11 : i64} {
  func.func @qkv_kernel(%arg0: i32, %arg1: i32, %arg2: memref<1x8x32xf32, #tpu.memory_space<vmem>>, %arg3: memref<1x32xf32, #tpu.memory_space<vmem>>, %arg4: memref<1x32xf32, #tpu.memory_space<vmem>>, %arg5: memref<1x32xf32, #tpu.memory_space<vmem>>, %arg6: memref<1x32xf32, #tpu.memory_space<vmem>>, %arg7: memref<32x96xbf16, #tpu.memory_space<vmem>>, %arg8: memref<1x96xf32, #tpu.memory_space<vmem>>, %arg9: memref<1x96xf32, #tpu.memory_space<vmem>>, %arg10: memref<1x8x96xbf16, #tpu.memory_space<vmem>>) attributes {dimension_semantics = [#tpu.dimension_semantics<parallel>, #tpu.dimension_semantics<parallel>], iteration_bounds = array<i64: 2, 1>, scalar_prefetch = 0 : i64, scratch_operands = 0 : i64, tpu.core_type = #tpu.core_type<tc>, window_params = [{transform_indices = @transform_0, window_bounds = array<i64: 1, 8, 32>}, {pipeline_mode = #tpu.pipeline_mode<synchronous>, transform_indices = @transform_1, window_bounds = array<i64: 1, 32>}, {pipeline_mode = #tpu.pipeline_mode<synchronous>, transform_indices = @transform_2, window_bounds = array<i64: 1, 32>}, {pipeline_mode = #tpu.pipeline_mode<synchronous>, transform_indices = @transform_3, window_bounds = array<i64: 1, 32>}, {pipeline_mode = #tpu.pipeline_mode<synchronous>, transform_indices = @transform_4, window_bounds = array<i64: 1, 32>}, {pipeline_mode = #tpu.pipeline_mode<synchronous>, transform_indices = @transform_5, window_bounds = array<i64: 32, 96>}, {pipeline_mode = #tpu.pipeline_mode<synchronous>, transform_indices = @transform_6, window_bounds = array<i64: 1, 96>}, {pipeline_mode = #tpu.pipeline_mode<synchronous>, transform_indices = @transform_7, window_bounds = array<i64: 1, 96>}, {transform_indices = @transform_8, window_bounds = array<i64: 1, 8, 96>}]} {
    %c0 = arith.constant 0 : index
    %c0_0 = arith.constant 0 : index
    %c0_1 = arith.constant 0 : index
    %0 = vector.load %arg2[%c0, %c0_0, %c0_1] : memref<1x8x32xf32, #tpu.memory_space<vmem>>, vector<1x8x32xf32>
    %1 = vector.shape_cast %0 : vector<1x8x32xf32> to vector<8x32xf32>
    %c0_2 = arith.constant 0 : index
    %c0_3 = arith.constant 0 : index
    %2 = vector.load %arg3[%c0_2, %c0_3] : memref<1x32xf32, #tpu.memory_space<vmem>>, vector<1x32xf32>
    %3 = vector.shape_cast %2 : vector<1x32xf32> to vector<32xf32>
    %c0_4 = arith.constant 0 : index
    %c0_5 = arith.constant 0 : index
    %4 = vector.load %arg4[%c0_4, %c0_5] : memref<1x32xf32, #tpu.memory_space<vmem>>, vector<1x32xf32>
    %5 = vector.shape_cast %4 : vector<1x32xf32> to vector<32xf32>
    %cst = arith.constant dense<0.000000e+00> : vector<8xf32>
    %6 = vector.multi_reduction <add>, %1, %cst [1] : vector<8x32xf32> to vector<8xf32>
    %7 = vector.shape_cast %6 : vector<8xf32> to vector<8x1xf32>
    %cst_6 = arith.constant 3.200000e+01 : f32
    %8 = vector.broadcast %cst_6 : f32 to vector<8x1xf32>
    %9 = arith.divf %7, %8 : vector<8x1xf32>
    %10 = vector.broadcast %9 : vector<8x1xf32> to vector<8x32xf32>
    %11 = arith.subf %1, %10 : vector<8x32xf32>
    %12 = arith.mulf %11, %11 : vector<8x32xf32>
    %cst_7 = arith.constant dense<0.000000e+00> : vector<8xf32>
    %13 = vector.multi_reduction <add>, %12, %cst_7 [1] : vector<8x32xf32> to vector<8xf32>
    %14 = vector.shape_cast %13 : vector<8xf32> to vector<8x1xf32>
    %cst_8 = arith.constant 3.200000e+01 : f32
    %15 = vector.broadcast %cst_8 : f32 to vector<8x1xf32>
    %16 = arith.divf %14, %15 : vector<8x1xf32>
    %17 = vector.broadcast %9 : vector<8x1xf32> to vector<8x32xf32>
    %18 = arith.subf %1, %17 : vector<8x32xf32>
    %cst_9 = arith.constant 9.99999974E-6 : f32
    %19 = vector.broadcast %cst_9 : f32 to vector<8x1xf32>
    %20 = arith.addf %16, %19 : vector<8x1xf32>
    %21 = math.rsqrt %20 : vector<8x1xf32>
    %22 = vector.broadcast %21 : vector<8x1xf32> to vector<8x32xf32>
    %23 = arith.mulf %18, %22 : vector<8x32xf32>
    %24 = vector.shape_cast %3 : vector<32xf32> to vector<1x32xf32>
    %25 = vector.broadcast %24 : vector<1x32xf32> to vector<8x32xf32>
    %26 = arith.mulf %23, %25 : vector<8x32xf32>
    %27 = vector.shape_cast %5 : vector<32xf32> to vector<1x32xf32>
    %28 = vector.broadcast %27 : vector<1x32xf32> to vector<8x32xf32>
    %29 = arith.addf %26, %28 : vector<8x32xf32>
    %c0_10 = arith.constant 0 : index
    %c0_11 = arith.constant 0 : index
    %30 = vector.load %arg5[%c0_10, %c0_11] : memref<1x32xf32, #tpu.memory_space<vmem>>, vector<1x32xf32>
    %31 = vector.shape_cast %30 : vector<1x32xf32> to vector<32xf32>
    %32 = vector.shape_cast %31 : vector<32xf32> to vector<1x32xf32>
    %33 = vector.broadcast %32 : vector<1x32xf32> to vector<8x32xf32>
    %34 = arith.mulf %29, %33 : vector<8x32xf32>
    %c0_12 = arith.constant 0 : index
    %c0_13 = arith.constant 0 : index
    %35 = vector.load %arg6[%c0_12, %c0_13] : memref<1x32xf32, #tpu.memory_space<vmem>>, vector<1x32xf32>
    %36 = vector.shape_cast %35 : vector<1x32xf32> to vector<32xf32>
    %37 = vector.shape_cast %36 : vector<32xf32> to vector<1x32xf32>
    %38 = vector.broadcast %37 : vector<1x32xf32> to vector<8x32xf32>
    %39 = arith.addf %34, %38 : vector<8x32xf32>
    %40 = arith.truncf %39 : vector<8x32xf32> to vector<8x32xbf16>
    %c0_14 = arith.constant 0 : index
    %c0_15 = arith.constant 0 : index
    %41 = vector.load %arg7[%c0_14, %c0_15] : memref<32x96xbf16, #tpu.memory_space<vmem>>, vector<32x96xbf16>
    %cst_16 = arith.constant dense<0.000000e+00> : vector<8x96xf32>
    %42 = tpu.matmul %40, %41, %cst_16 {dimension_numbers = #tpu.dot_dimension_numbers<[1], [0], [0], [1], [0, 0, 1, 1], [], []>} : vector<8x32xbf16>, vector<32x96xbf16>, vector<8x96xf32> -> vector<8x96xf32>
    %c0_17 = arith.constant 0 : index
    %c0_18 = arith.constant 0 : index
    %43 = vector.load %arg8[%c0_17, %c0_18] : memref<1x96xf32, #tpu.memory_space<vmem>>, vector<1x96xf32>
    %44 = vector.shape_cast %43 : vector<1x96xf32> to vector<96xf32>
    %45 = vector.shape_cast %44 : vector<96xf32> to vector<1x96xf32>
    %46 = vector.broadcast %45 : vector<1x96xf32> to vector<8x96xf32>
    %47 = arith.mulf %42, %46 : vector<8x96xf32>
    %c0_19 = arith.constant 0 : index
    %c0_20 = arith.constant 0 : index
    %48 = vector.load %arg9[%c0_19, %c0_20] : memref<1x96xf32, #tpu.memory_space<vmem>>, vector<1x96xf32>
    %49 = vector.shape_cast %48 : vector<1x96xf32> to vector<96xf32>
    %50 = vector.shape_cast %49 : vector<96xf32> to vector<1x96xf32>
    %51 = vector.broadcast %50 : vector<1x96xf32> to vector<8x96xf32>
    %52 = arith.addf %47, %51 : vector<8x96xf32>
    %53 = arith.truncf %52 : vector<8x96xf32> to vector<8x96xbf16>
    %c0_21 = arith.constant 0 : index
    %c0_22 = arith.constant 0 : index
    %c0_23 = arith.constant 0 : index
    %54 = vector.load %arg10[%c0_21, %c0_22, %c0_23] : memref<1x8x96xbf16, #tpu.memory_space<vmem>>, vector<1x8x96xbf16>
    %55 = vector.shape_cast %54 : vector<1x8x96xbf16> to vector<8x96xbf16>
    %56 = vector.shape_cast %53 : vector<8x96xbf16> to vector<1x8x96xbf16>
    tpu.vector_store %arg10[%c0_21, %c0_22, %c0_23], %56 {strides = array<i32>} : memref<1x8x96xbf16, #tpu.memory_space<vmem>>, vector<1x8x96xbf16>,
    return
  }
  func.func @transform_0(%arg0: i32, %arg1: i32) -> (i32, i32, i32) {
    %c0_i32 = arith.constant 0 : i32
    %c0_i32_0 = arith.constant 0 : i32
    return %arg0, %arg1, %c0_i32 : i32, i32, i32
  }
  func.func @transform_1(%arg0: i32, %arg1: i32) -> (i32, i32) {
    %c0_i32 = arith.constant 0 : i32
    %c0_i32_0 = arith.constant 0 : i32
    %c0_i32_1 = arith.constant 0 : i32
    return %c0_i32, %c0_i32_0 : i32, i32
  }
  func.func @transform_2(%arg0: i32, %arg1: i32) -> (i32, i32) {
    %c0_i32 = arith.constant 0 : i32
    %c0_i32_0 = arith.constant 0 : i32
    %c0_i32_1 = arith.constant 0 : i32
    return %c0_i32, %c0_i32_0 : i32, i32
  }
  func.func @transform_3(%arg0: i32, %arg1: i32) -> (i32, i32) {
    %c0_i32 = arith.constant 0 : i32
    %c0_i32_0 = arith.constant 0 : i32
    %c0_i32_1 = arith.constant 0 : i32
    return %c0_i32, %c0_i32_0 : i32, i32
  }
  func.func @transform_4(%arg0: i32, %arg1: i32) -> (i32, i32) {
    %c0_i32 = arith.constant 0 : i32
    %c0_i32_0 = arith.constant 0 : i32
    %c0_i32_1 = arith.constant 0 : i32
    return %c0_i32, %c0_i32_0 : i32, i32
  }
  func.func @transform_5(%arg0: i32, %arg1: i32) -> (i32, i32) {
    %c0_i32 = arith.constant 0 : i32
    %c0_i32_0 = arith.constant 0 : i32
    %c0_i32_1 = arith.constant 0 : i32
    return %c0_i32, %c0_i32_0 : i32, i32
  }
  func.func @transform_6(%arg0: i32, %arg1: i32) -> (i32, i32) {
    %c0_i32 = arith.constant 0 : i32
    %c0_i32_0 = arith.constant 0 : i32
    %c0_i32_1 = arith.constant 0 : i32
    return %c0_i32, %c0_i32_0 : i32, i32
  }
  func.func @transform_7(%arg0: i32, %arg1: i32) -> (i32, i32) {
    %c0_i32 = arith.constant 0 : i32
    %c0_i32_0 = arith.constant 0 : i32
    %c0_i32_1 = arith.constant 0 : i32
    return %c0_i32, %c0_i32_0 : i32, i32
  }
  func.func @transform_8(%arg0: i32, %arg1: i32) -> (i32, i32, i32) {
    %c0_i32 = arith.constant 0 : i32
    %c0_i32_0 = arith.constant 0 : i32
    return %arg0, %arg1, %c0_i32 : i32, i32, i32
  }
}

module attributes {stable_mosaic.version = 11 : i64} {
  func.func @qkv_kernel(%arg0: i32, %arg1: i32, %arg2: memref<1x8x32xf32, #tpu.memory_space<vmem>>, %arg3: memref<1x32xf32, #tpu.memory_space<vmem>>, %arg4: memref<1x32xf32, #tpu.memory_space<vmem>>, %arg5: memref<1x32xf32, #tpu.memory_space<vmem>>, %arg6: memref<1x32xf32, #tpu.memory_space<vmem>>, %arg7: memref<32x96xbf16, #tpu.memory_space<vmem>>, %arg8: memref<1x96xf32, #tpu.memory_space<vmem>>, %arg9: memref<1x96xf32, #tpu.memory_space<vmem>>, %arg10: memref<1x8x96xbf16, #tpu.memory_space<vmem>>) attributes {dimension_semantics = [#tpu.dimension_semantics<parallel>, #tpu.dimension_semantics<parallel>], iteration_bounds = array<i64: 2, 1>, scalar_prefetch = 0 : i64, scratch_operands = 0 : i64, tpu.core_type = #tpu.core_type<tc>, window_params = [{transform_indices = @transform_0, window_bounds = array<i64: 1, 8, 32>}, {pipeline_mode = #tpu.pipeline_mode<synchronous>, transform_indices = @transform_1, window_bounds = array<i64: 1, 32>}, {pipeline_mode = #tpu.pipeline_mode<synchronous>, transform_indices = @transform_2, window_bounds = array<i64: 1, 32>}, {pipeline_mode = #tpu.pipeline_mode<synchronous>, transform_indices = @transform_3, window_bounds = array<i64: 1, 32>}, {pipeline_mode = #tpu.pipeline_mode<synchronous>, transform_indices = @transform_4, window_bounds = array<i64: 1, 32>}, {pipeline_mode = #tpu.pipeline_mode<synchronous>, transform_indices = @transform_5, window_bounds = array<i64: 32, 96>}, {pipeline_mode = #tpu.pipeline_mode<synchronous>, transform_indices = @transform_6, window_bounds = array<i64: 1, 96>}, {pipeline_mode = #tpu.pipeline_mode<synchronous>, transform_indices = @transform_7, window_bounds = array<i64: 1, 96>}, {transform_indices = @transform_8, window_bounds = array<i64: 1, 8, 96>}]} {
    %c0 = arith.constant 0 : index
    %c0_0 = arith.constant 0 : index
    %c0_1 = arith.constant 0 : index
    %0 = vector.load %arg2[%c0, %c0_0, %c0_1] : memref<1x8x32xf32, #tpu.memory_space<vmem>>, vector<1x8x32xf32>
    %1 = vector.shape_cast %0 : vector<1x8x32xf32> to vector<8x32xf32>
    %c0_2 = arith.constant 0 : index
    %c0_3 = arith.constant 0 : index
    %2 = vector.load %arg3[%c0_2, %c0_3] : memref<1x32xf32, #tpu.memory_space<vmem>>, vector<1x32xf32>
    %3 = vector.shape_cast %2 : vector<1x32xf32> to vector<32xf32>
    %c0_4 = arith.constant 0 : index
    %c0_5 = arith.constant 0 : index
    %4 = vector.load %arg4[%c0_4, %c0_5] : memref<1x32xf32, #tpu.memory_space<vmem>>, vector<1x32xf32>
    %5 = vector.shape_cast %4 : vector<1x32xf32> to vector<32xf32>
    %cst = arith.constant dense<0.000000e+00> : vector<8xf32>
    %6 = vector.multi_reduction <add>, %1, %cst [1] : vector<8x32xf32> to vector<8xf32>
    %7 = vector.shape_cast %6 : vector<8xf32> to vector<8x1xf32>
    %cst_6 = arith.constant 3.200000e+01 : f32
    %8 = vector.broadcast %cst_6 : f32 to vector<8x1xf32>
    %9 = arith.divf %7, %8 : vector<8x1xf32>
    %10 = vector.broadcast %9 : vector<8x1xf32> to vector<8x32xf32>
    %11 = arith.subf %1, %10 : vector<8x32xf32>
    %12 = arith.mulf %11, %11 : vector<8x32xf32>
    %cst_7 = arith.constant dense<0.000000e+00> : vector<8xf32>
    %13 = vector.multi_reduction <add>, %12, %cst_7 [1] : vector<8x32xf32> to vector<8xf32>
    %14 = vector.shape_cast %13 : vector<8xf32> to vector<8x1xf32>
    %cst_8 = arith.constant 3.200000e+01 : f32
    %15 = vector.broadcast %cst_8 : f32 to vector<8x1xf32>
    %16 = arith.divf %14, %15 : vector<8x1xf32>
    %17 = vector.broadcast %9 : vector<8x1xf32> to vector<8x32xf32>
    %18 = arith.subf %1, %17 : vector<8x32xf32>
    %cst_9 = arith.constant 9.99999974E-6 : f32
    %19 = vector.broadcast %cst_9 : f32 to vector<8x1xf32>
    %20 = arith.addf %16, %19 : vector<8x1xf32>
    %21 = math.rsqrt %20 : vector<8x1xf32>
    %22 = vector.broadcast %21 : vector<8x1xf32> to vector<8x32xf32>
    %23 = arith.mulf %18, %22 : vector<8x32xf32>
    %24 = vector.shape_cast %3 : vector<32xf32> to vector<1x32xf32>
    %25 = vector.broadcast %24 : vector<1x32xf32> to vector<8x32xf32>
    %26 = arith.mulf %23, %25 : vector<8x32xf32>
    %27 = vector.shape_cast %5 : vector<32xf32> to vector<1x32xf32>
    %28 = vector.broadcast %27 : vector<1x32xf32> to vector<8x32xf32>
    %29 = arith.addf %26, %28 : vector<8x32xf32>
    %c0_10 = arith.constant 0 : index
    %c0_11 = arith.constant 0 : index
    %30 = vector.load %arg5[%c0_10, %c0_11] : memref<1x32xf32, #tpu.memory_space<vmem>>, vector<1x32xf32>
    %31 = vector.shape_cast %30 : vector<1x32xf32> to vector<32xf32>
    %32 = vector.shape_cast %31 : vector<32xf32> to vector<1x32xf32>
    %33 = vector.broadcast %32 : vector<1x32xf32> to vector<8x32xf32>
    %34 = arith.mulf %29, %33 : vector<8x32xf32>
    %c0_12 = arith.constant 0 : index
    %c0_13 = arith.constant 0 : index
    %35 = vector.load %arg6[%c0_12, %c0_13] : memref<1x32xf32, #tpu.memory_space<vmem>>, vector<1x32xf32>
    %36 = vector.shape_cast %35 : vector<1x32xf32> to vector<32xf32>
    %37 = vector.shape_cast %36 : vector<32xf32> to vector<1x32xf32>
    %38 = vector.broadcast %37 : vector<1x32xf32> to vector<8x32xf32>
    %39 = arith.addf %34, %38 : vector<8x32xf32>
    %40 = arith.truncf %39 : vector<8x32xf32> to vector<8x32xbf16>
    %c0_14 = arith.constant 0 : index
    %c0_15 = arith.constant 0 : index
    %41 = vector.load %arg7[%c0_14, %c0_15] : memref<32x96xbf16, #tpu.memory_space<vmem>>, vector<32x96xbf16>
    %cst_16 = arith.constant dense<0.000000e+00> : vector<8x96xf32>
    %42 = tpu.matmul %40, %41, %cst_16 {dimension_numbers = #tpu.dot_dimension_numbers<[1], [0], [0], [1], [0, 0, 1, 1], [], []>} : vector<8x32xbf16>, vector<32x96xbf16>, vector<8x96xf32> -> vector<8x96xf32>
    %c0_17 = arith.constant 0 : index
    %c0_18 = arith.constant 0 : index
    %43 = vector.load %arg8[%c0_17, %c0_18] : memref<1x96xf32, #tpu.memory_space<vmem>>, vector<1x96xf32>
    %44 = vector.shape_cast %43 : vector<1x96xf32> to vector<96xf32>
    %45 = vector.shape_cast %44 : vector<96xf32> to vector<1x96xf32>
    %46 = vector.broadcast %45 : vector<1x96xf32> to vector<8x96xf32>
    %47 = arith.mulf %42, %46 : vector<8x96xf32>
    %c0_19 = arith.constant 0 : index
    %c0_20 = arith.constant 0 : index
    %48 = vector.load %arg9[%c0_19, %c0_20] : memref<1x96xf32, #tpu.memory_space<vmem>>, vector<1x96xf32>
    %49 = vector.shape_cast %48 : vector<1x96xf32> to vector<96xf32>
    %50 = vector.shape_cast %49 : vector<96xf32> to vector<1x96xf32>
    %51 = vector.broadcast %50 : vector<1x96xf32> to vector<8x96xf32>
    %52 = arith.addf %47, %51 : vector<8x96xf32>
    %53 = arith.truncf %52 : vector<8x96xf32> to vector<8x96xbf16>
    %c0_21 = arith.constant 0 : index
    %c0_22 = arith.constant 0 : index
    %c0_23 = arith.constant 0 : index
    %54 = vector.load %arg10[%c0_21, %c0_22, %c0_23] : memref<1x8x96xbf16, #tpu.memory_space<vmem>>, vector<1x8x96xbf16>
    %55 = vector.shape_cast %54 : vector<1x8x96xbf16> to vector<8x96xbf16>
    %56 = vector.shape_cast %53 : vector<8x96xbf16> to vector<1x8x96xbf16>
    tpu.vector_store %arg10[%c0_21, %c0_22, %c0_23], %56 {strides = array<i32>} : memref<1x8x96xbf16, #tpu.memory_space<vmem>>, vector<1x8x96xbf16>,
    return
  }
  func.func @transform_0(%arg0: i32, %arg1: i32) -> (i32, i32, i32) {
    %c0_i32 = arith.constant 0 : i32
    %c0_i32_0 = arith.constant 0 : i32
    return %arg0, %arg1, %c0_i32 : i32, i32, i32
  }
  func.func @transform_1(%arg0: i32, %arg1: i32) -> (i32, i32) {
    %c0_i32 = arith.constant 0 : i32
    %c0_i32_0 = arith.constant 0 : i32
    %c0_i32_1 = arith.constant 0 : i32
    return %c0_i32, %c0_i32_0 : i32, i32
  }
  func.func @transform_2(%arg0: i32, %arg1: i32) -> (i32, i32) {
    %c0_i32 = arith.constant 0 : i32
    %c0_i32_0 = arith.constant 0 : i32
    %c0_i32_1 = arith.constant 0 : i32
    return %c0_i32, %c0_i32_0 : i32, i32
  }
  func.func @transform_3(%arg0: i32, %arg1: i32) -> (i32, i32) {
    %c0_i32 = arith.constant 0 : i32
    %c0_i32_0 = arith.constant 0 : i32
    %c0_i32_1 = arith.constant 0 : i32
    return %c0_i32, %c0_i32_0 : i32, i32
  }
  func.func @transform_4(%arg0: i32, %arg1: i32) -> (i32, i32) {
    %c0_i32 = arith.constant 0 : i32
    %c0_i32_0 = arith.constant 0 : i32
    %c0_i32_1 = arith.constant 0 : i32
    return %c0_i32, %c0_i32_0 : i32, i32
  }
  func.func @transform_5(%arg0: i32, %arg1: i32) -> (i32, i32) {
    %c0_i32 = arith.constant 0 : i32
    %c0_i32_0 = arith.constant 0 : i32
    %c0_i32_1 = arith.constant 0 : i32
    return %c0_i32, %c0_i32_0 : i32, i32
  }
  func.func @transform_6(%arg0: i32, %arg1: i32) -> (i32, i32) {
    %c0_i32 = arith.constant 0 : i32
    %c0_i32_0 = arith.constant 0 : i32
    %c0_i32_1 = arith.constant 0 : i32
    return %c0_i32, %c0_i32_0 : i32, i32
  }
  func.func @transform_7(%arg0: i32, %arg1: i32) -> (i32, i32) {
    %c0_i32 = arith.constant 0 : i32
    %c0_i32_0 = arith.constant 0 : i32
    %c0_i32_1 = arith.constant 0 : i32
    return %c0_i32, %c0_i32_0 : i32, i32
  }
  func.func @transform_8(%arg0: i32, %arg1: i32) -> (i32, i32, i32) {
    %c0_i32 = arith.constant 0 : i32
    %c0_i32_0 = arith.constant 0 : i32
    return %arg0, %arg1, %c0_i32 : i32, i32, i32
  }
}

</mosaic_0001>

<llo_original>
// kernel: tpu_custom_call.1
$region0: #{tpu_custom_call.1}
  #allocation0 [shape = 'u32[]', space=smem, size = 0x4, offset = 0x4, fixed_abs, tag = 'smem constant byte address 0x4 - core index']
  #allocation1 [shape = 'u32[144,128]{1,0:T(1,128)}', space=vmem, size = 0x12000, scoped, tag = 'internal scratch']
  %s0 = inlined_call_operand.hbm [shape: f32[2,8,32], index: 0, kind: input, shape index: {}]
  %s1 = inlined_call_operand.hbm [shape: f32[1,32], index: 1, kind: input, shape index: {}]
  %s2 = inlined_call_operand.hbm [shape: f32[1,32], index: 2, kind: input, shape index: {}]
  %s3 = inlined_call_operand.hbm [shape: f32[1,32], index: 3, kind: input, shape index: {}]
  %s4 = inlined_call_operand.hbm [shape: f32[1,32], index: 4, kind: input, shape index: {}]
  %s5 = inlined_call_operand.hbm [shape: bf16[32,96], index: 5, kind: input, shape index: {}]
  %s6 = inlined_call_operand.hbm [shape: f32[1,96], index: 6, kind: input, shape index: {}]
  %s7 = inlined_call_operand.hbm [shape: f32[1,96], index: 7, kind: input, shape index: {}]
  %s8 = inlined_call_operand.hbm [shape: bf16[2,8,96], index: 8, kind: output, shape index: {}]
  %s9 = sld [smem:[#allocation0]]
  $region97: #{tpu_custom_call.1} parent=0
    _
  %s11 = ssub.s32 1, %s9
  %s12 = scalar_select 0, %s11, %s9
  $region1: #{tpu_custom_call.1} parent=0
    #allocation2 [shape = 'u8[8192]{0}', space=vmem, size = 0x2000, scoped, tag = 'input window, operand 0']
    #allocation3 [shape = 's32[2]{0}', space=sflag, size = 0x8, scoped, tag = 'scoped memory for tpu_custom_call.1']
    #allocation4 [shape = 's32[2]{0}', space=sflag, size = 0x8, scoped, tag = 'scoped memory for tpu_custom_call.1']
    #allocation5 [shape = 'u8[512]{0}', space=vmem, size = 0x400, scoped, tag = 'input window, operand 1, single buffered']
    #allocation6 [shape = 's32[1]{0}', space=sflag, size = 0x4, scoped, tag = 'scoped memory for tpu_custom_call.1']
    #allocation7 [shape = 'u8[512]{0}', space=vmem, size = 0x400, scoped, tag = 'input window, operand 2, single buffered']
    #allocation8 [shape = 'u8[512]{0}', space=vmem, size = 0x400, scoped, tag = 'input window, operand 3, single buffered']
    #allocation9 [shape = 's32[1]{0}', space=sflag, size = 0x4, scoped, tag = 'scoped memory for tpu_custom_call.1']
    #allocation10 [shape = 'u8[512]{0}', space=vmem, size = 0x400, scoped, tag = 'input window, operand 4, single buffered']
    #allocation11 [shape = 'u8[8192]{0}', space=vmem, size = 0x2000, scoped, tag = 'input window, operand 5, single buffered']
    #allocation12 [shape = 's32[1]{0}', space=sflag, size = 0x4, scoped, tag = 'scoped memory for tpu_custom_call.1']
    #allocation13 [shape = 'u8[512]{0}', space=vmem, size = 0x400, scoped, tag = 'input window, operand 6, single buffered']
    #allocation14 [shape = 'u8[512]{0}', space=vmem, size = 0x400, scoped, tag = 'input window, operand 7, single buffered']
    #allocation15 [shape = 's32[1]{0}', space=sflag, size = 0x4, scoped, tag = 'scoped memory for tpu_custom_call.1']
    #allocation16 [shape = 'u8[4096]{0}', space=vmem, size = 0x1000, scoped, tag = 'output window, operand 0']
    %13 = vsyncpa [#allocation3], 0
    %s14 = scalar_lea.sflag [#allocation3], 1
    %15 = vsyncpa %s14, 0
    %16 = vsyncpa [#allocation6], 0
    %17 = vsyncpa [#allocation9], 0
    %18 = vsyncpa [#allocation12], 0
    %19 = vsyncpa [#allocation15], 0
    %20 = vsyncpa [#allocation4], 0
    %s21 = scalar_lea.sflag [#allocation4], 1
    %22 = vsyncpa %s21, 0
    loop: start=0, step=1, limit=4
    $region2: #{tpu_custom_call.1} parent=1 // loop_pre_header
      _
    $region3: #{tpu_custom_call.1} parent=1 // loop_header
      %s24 = sphi 0, %s28
      %p25 = scmp.ge.s32.totalorder %s24, 4
      %s31 = sphi 0, %s43
      %s32 = sphi 0, %s39
      %s33 = sphi 0, %s31
      %s34 = sphi 0, %s32
      %s35 = sphi 0, %s33
      %s36 = sphi 0, %s34
      %s48 = sphi 0, %s50
      %s51 = sphi 0, %s48
      %s52 = sphi 0, %s51
      %s68 = sphi 0, %s52
      %s72 = sphi 0, %s72
      %s74 = sphi 0, %s72
      %s75 = sphi 0, %s74
      %s89 = sphi 0, %s75
      %s93 = sphi 0, %s93
      %s95 = sphi 0, %s93
      %s96 = sphi 0, %s95
      %s110 = sphi 0, %s96
      %s114 = sphi 0, %s114
      %s116 = sphi 0, %s114
      %s117 = sphi 0, %s116
      %s131 = sphi 0, %s117
      %s135 = sphi 0, %s135
      %s137 = sphi 0, %s135
      %s138 = sphi 0, %s137
      %s152 = sphi 0, %s138
      %s156 = sphi 0, %s156
      %s158 = sphi 0, %s156
      %s159 = sphi 0, %s158
      %s173 = sphi 0, %s159
      %s177 = sphi 0, %s177
      %s179 = sphi 0, %s177
      %s180 = sphi 0, %s179
      %s194 = sphi 0, %s180
      %s198 = sphi 0, %s198
      %s200 = sphi 0, %s198
      %s201 = sphi 0, %s200
      %s215 = sphi 0, %s201
      %s223 = sphi 0, %s225
      %s226 = sphi 0, %s223
      %s227 = sphi 0, %s226
      %s243 = sphi 0, %s227
    $region4: #{tpu_custom_call.1} parent=1 // loop_header_branch
      %27 = sbr.rel (%p25) target = $region8
    $region5: #{tpu_custom_call.1} parent=1 // loop_body
      %s29 = ssub.s32 %s24, 1
      %s30 = ssub.s32 %s24, 2
      %s37 = sadd.s32 1, %s32
      %p38 = scmp.ge.s32.totalorder %s37, 1
      %s39 = scalar_select %p38, 0, %s37
      %s40 = sadd.s32 1, %s31
      %s41 = scalar_select %p38, %s40, %s31
      %p42 = scmp.ge.s32.totalorder %s41, 2
      %s43 = scalar_select %p42, 0, %s41
      %s44 = ssub.s32 %s31, %s43
      %s45 = ssub.s32 %s32, %s39
      %s46 = sor.u32 %s44, %s45
      %p47 = scmp.eq.s32.totalorder %s46, 0
      %s49 = sadd.s32 %s48, 1
      %s50 = scalar_select %p47, %s48, %s49
      %p53 = pneg %p47
      %p54 = scmp.eq.s32.totalorder %s24, 1
      %p55 = por %p53, %p54
      %p56 = scmp.ne.s32.totalorder %s48, %s51
      %p57 = scmp.eq.s32.totalorder %s24, 0
      %p58 = por %p56, %p57
      %p59 = scmp.ne.s32.totalorder %s48, %s51
      %p60 = scmp.eq.s32.totalorder %s29, 1
      %p61 = por %p59, %p60
      %p62 = scmp.ne.s32.totalorder %s51, %s52
      %p63 = scmp.eq.s32.totalorder %s29, 0
      %p64 = por %p62, %p63
      %p65 = scmp.ne.s32.totalorder %s51, %s52
      %p66 = scmp.eq.s32.totalorder %s30, 1
      %p67 = por %p65, %p66
      %p69 = scmp.ne.s32.totalorder %s52, %s68
      %p70 = scmp.eq.s32.totalorder %s30, 0
      %p71 = por %p69, %p70
      %s73 = sadd.s32 %s72, 1
      %p76 = scmp.eq.s32.totalorder %s24, 1
      %p77 = scmp.ne.s32.totalorder %s72, %s74
      %p78 = scmp.eq.s32.totalorder %s24, 0
      %p79 = por %p77, %p78
      %p80 = scmp.ne.s32.totalorder %s72, %s74
      %p81 = scmp.eq.s32.totalorder %s29, 1
      %p82 = por %p80, %p81
      %p83 = scmp.ne.s32.totalorder %s74, %s75
      %p84 = scmp.eq.s32.totalorder %s29, 0
      %p85 = por %p83, %p84
      %p86 = scmp.ne.s32.totalorder %s74, %s75
      %p87 = scmp.eq.s32.totalorder %s30, 1
      %p88 = por %p86, %p87
      %p90 = scmp.ne.s32.totalorder %s75, %s89
      %p91 = scmp.eq.s32.totalorder %s30, 0
      %p92 = por %p90, %p91
      %s94 = sadd.s32 %s93, 1
      %p97 = scmp.eq.s32.totalorder %s24, 1
      %p98 = scmp.ne.s32.totalorder %s93, %s95
      %p99 = scmp.eq.s32.totalorder %s24, 0
      %p100 = por %p98, %p99
      %p101 = scmp.ne.s32.totalorder %s93, %s95
      %p102 = scmp.eq.s32.totalorder %s29, 1
      %p103 = por %p101, %p102
      %p104 = scmp.ne.s32.totalorder %s95, %s96
      %p105 = scmp.eq.s32.totalorder %s29, 0
      %p106 = por %p104, %p105
      %p107 = scmp.ne.s32.totalorder %s95, %s96
      %p108 = scmp.eq.s32.totalorder %s30, 1
      %p109 = por %p107, %p108
      %p111 = scmp.ne.s32.totalorder %s96, %s110
      %p112 = scmp.eq.s32.totalorder %s30, 0
      %p113 = por %p111, %p112
      %s115 = sadd.s32 %s114, 1
      %p118 = scmp.eq.s32.totalorder %s24, 1
      %p119 = scmp.ne.s32.totalorder %s114, %s116
      %p120 = scmp.eq.s32.totalorder %s24, 0
      %p121 = por %p119, %p120
      %p122 = scmp.ne.s32.totalorder %s114, %s116
      %p123 = scmp.eq.s32.totalorder %s29, 1
      %p124 = por %p122, %p123
      %p125 = scmp.ne.s32.totalorder %s116, %s117
      %p126 = scmp.eq.s32.totalorder %s29, 0
      %p127 = por %p125, %p126
      %p128 = scmp.ne.s32.totalorder %s116, %s117
      %p129 = scmp.eq.s32.totalorder %s30, 1
      %p130 = por %p128, %p129
      %p132 = scmp.ne.s32.totalorder %s117, %s131
      %p133 = scmp.eq.s32.totalorder %s30, 0
      %p134 = por %p132, %p133
      %s136 = sadd.s32 %s135, 1
      %p139 = scmp.eq.s32.totalorder %s24, 1
      %p140 = scmp.ne.s32.totalorder %s135, %s137
      %p141 = scmp.eq.s32.totalorder %s24, 0
      %p142 = por %p140, %p141
      %p143 = scmp.ne.s32.totalorder %s135, %s137
      %p144 = scmp.eq.s32.totalorder %s29, 1
      %p145 = por %p143, %p144
      %p146 = scmp.ne.s32.totalorder %s137, %s138
      %p147 = scmp.eq.s32.totalorder %s29, 0
      %p148 = por %p146, %p147
      %p149 = scmp.ne.s32.totalorder %s137, %s138
      %p150 = scmp.eq.s32.totalorder %s30, 1
      %p151 = por %p149, %p150
      %p153 = scmp.ne.s32.totalorder %s138, %s152
      %p154 = scmp.eq.s32.totalorder %s30, 0
      %p155 = por %p153, %p154
      %s157 = sadd.s32 %s156, 1
      %p160 = scmp.eq.s32.totalorder %s24, 1
      %p161 = scmp.ne.s32.totalorder %s156, %s158
      %p162 = scmp.eq.s32.totalorder %s24, 0
      %p163 = por %p161, %p162
      %p164 = scmp.ne.s32.totalorder %s156, %s158
      %p165 = scmp.eq.s32.totalorder %s29, 1
      %p166 = por %p164, %p165
      %p167 = scmp.ne.s32.totalorder %s158, %s159
      %p168 = scmp.eq.s32.totalorder %s29, 0
      %p169 = por %p167, %p168
      %p170 = scmp.ne.s32.totalorder %s158, %s159
      %p171 = scmp.eq.s32.totalorder %s30, 1
      %p172 = por %p170, %p171
      %p174 = scmp.ne.s32.totalorder %s159, %s173
      %p175 = scmp.eq.s32.totalorder %s30, 0
      %p176 = por %p174, %p175
      %s178 = sadd.s32 %s177, 1
      %p181 = scmp.eq.s32.totalorder %s24, 1
      %p182 = scmp.ne.s32.totalorder %s177, %s179
      %p183 = scmp.eq.s32.totalorder %s24, 0
      %p184 = por %p182, %p183
      %p185 = scmp.ne.s32.totalorder %s177, %s179
      %p186 = scmp.eq.s32.totalorder %s29, 1
      %p187 = por %p185, %p186
      %p188 = scmp.ne.s32.totalorder %s179, %s180
      %p189 = scmp.eq.s32.totalorder %s29, 0
      %p190 = por %p188, %p189
      %p191 = scmp.ne.s32.totalorder %s179, %s180
      %p192 = scmp.eq.s32.totalorder %s30, 1
      %p193 = por %p191, %p192
      %p195 = scmp.ne.s32.totalorder %s180, %s194
      %p196 = scmp.eq.s32.totalorder %s30, 0
      %p197 = por %p195, %p196
      %s199 = sadd.s32 %s198, 1
      %p202 = scmp.eq.s32.totalorder %s24, 1
      %p203 = scmp.ne.s32.totalorder %s198, %s200
      %p204 = scmp.eq.s32.totalorder %s24, 0
      %p205 = por %p203, %p204
      %p206 = scmp.ne.s32.totalorder %s198, %s200
      %p207 = scmp.eq.s32.totalorder %s29, 1
      %p208 = por %p206, %p207
      %p209 = scmp.ne.s32.totalorder %s200, %s201
      %p210 = scmp.eq.s32.totalorder %s29, 0
      %p211 = por %p209, %p210
      %p212 = scmp.ne.s32.totalorder %s200, %s201
      %p213 = scmp.eq.s32.totalorder %s30, 1
      %p214 = por %p212, %p213
      %p216 = scmp.ne.s32.totalorder %s201, %s215
      %p217 = scmp.eq.s32.totalorder %s30, 0
      %p218 = por %p216, %p217
      %s219 = ssub.s32 %s31, %s43
      %s220 = ssub.s32 %s32, %s39
      %s221 = sor.u32 %s219, %s220
      %p222 = scmp.eq.s32.totalorder %s221, 0
      %s224 = sadd.s32 %s223, 1
      %s225 = scalar_select %p222, %s223, %s224
      %p228 = pneg %p222
      %p229 = scmp.eq.s32.totalorder %s24, 1
      %p230 = por %p228, %p229
      %p231 = scmp.ne.s32.totalorder %s223, %s226
      %p232 = scmp.eq.s32.totalorder %s24, 0
      %p233 = por %p231, %p232
      %p234 = scmp.ne.s32.totalorder %s223, %s226
      %p235 = scmp.eq.s32.totalorder %s29, 1
      %p236 = por %p234, %p235
      %p237 = scmp.ne.s32.totalorder %s226, %s227
      %p238 = scmp.eq.s32.totalorder %s29, 0
      %p239 = por %p237, %p238
      %p240 = scmp.ne.s32.totalorder %s226, %s227
      %p241 = scmp.eq.s32.totalorder %s30, 1
      %p242 = por %p240, %p241
      %p244 = scmp.ne.s32.totalorder %s227, %s243
      %p245 = scmp.eq.s32.totalorder %s30, 0
      %p246 = por %p244, %p245
      %p247 = scmp.le.s32.totalorder 1, %s24
      %p248 = scmp.lt.s32.totalorder %s24, 3
      %p249 = pnand %p247, %p248
      %p250 = pneg %p249
      // Predicated region
      $region9: #{tpu_custom_call.1} parent=5 // pred_check
        _
      $region10: #{tpu_custom_call.1} parent=5 // pred_check_branch
        %252 = sbr.rel (%p249) target = $region12
      $region11: #{tpu_custom_call.1} parent=5 // pred_region
        %s253 = ssub.s32 %s24, 1
        // Predicated region
        $region13: #{tpu_custom_call.1} parent=11 // pred_check
          %p254 = pneg %p85
        $region14: #{tpu_custom_call.1} parent=11 // pred_check_branch
          %256 = sbr.rel (%p254) target = $region16
        $region15: #{tpu_custom_call.1} parent=11 // pred_region
          %s258 = ssub.s32 16, 16
          %259 = vsyncadd [#allocation6], %s258
          %s261 = sshll.u32 [#allocation5], 4
          %s262 = int_to_ptr.vmem [resolvable:$true] %s261
          %264 = dma.hbm_to_vmem [thread:$0]  %s1, 16, %s262, [#allocation6]
        $region16: #{tpu_custom_call.1} parent=11 // pred_fallthru
          _
        // Predicated region
        $region17: #{tpu_custom_call.1} parent=11 // pred_check
          %p265 = pneg %p106
        $region18: #{tpu_custom_call.1} parent=11 // pred_check_branch
          %267 = sbr.rel (%p265) target = $region20
        $region19: #{tpu_custom_call.1} parent=11 // pred_region
          %s269 = ssub.s32 16, 16
          %270 = vsyncadd [#allocation6], %s269
          %s272 = sshll.u32 [#allocation7], 4
          %s273 = int_to_ptr.vmem [resolvable:$true] %s272
          %275 = dma.hbm_to_vmem [thread:$0]  %s2, 16, %s273, [#allocation6]
        $region20: #{tpu_custom_call.1} parent=11 // pred_fallthru
          _
        // Predicated region
        $region21: #{tpu_custom_call.1} parent=11 // pred_check
          %p276 = pneg %p127
        $region22: #{tpu_custom_call.1} parent=11 // pred_check_branch
          %278 = sbr.rel (%p276) target = $region24
        $region23: #{tpu_custom_call.1} parent=11 // pred_region
          %s280 = ssub.s32 16, 16
          %281 = vsyncadd [#allocation9], %s280
          %s283 = sshll.u32 [#allocation8], 4
          %s284 = int_to_ptr.vmem [resolvable:$true] %s283
          %286 = dma.hbm_to_vmem [thread:$0]  %s3, 16, %s284, [#allocation9]
        $region24: #{tpu_custom_call.1} parent=11 // pred_fallthru
          _
        // Predicated region
        $region25: #{tpu_custom_call.1} parent=11 // pred_check
          %p287 = pneg %p148
        $region26: #{tpu_custom_call.1} parent=11 // pred_check_branch
          %289 = sbr.rel (%p287) target = $region28
        $region27: #{tpu_custom_call.1} parent=11 // pred_region
          %s291 = ssub.s32 16, 16
          %292 = vsyncadd [#allocation9], %s291
          %s294 = sshll.u32 [#allocation10], 4
          %s295 = int_to_ptr.vmem [resolvable:$true] %s294
          %297 = dma.hbm_to_vmem [thread:$0]  %s4, 16, %s295, [#allocation9]
        $region28: #{tpu_custom_call.1} parent=11 // pred_fallthru
          _
        // Predicated region
        $region29: #{tpu_custom_call.1} parent=11 // pred_check
          %p298 = pneg %p169
        $region30: #{tpu_custom_call.1} parent=11 // pred_check_branch
          %300 = sbr.rel (%p298) target = $region32
        $region31: #{tpu_custom_call.1} parent=11 // pred_region
          %s302 = ssub.s32 256, 256
          %303 = vsyncadd [#allocation12], %s302
          %s304 = sshll.u32 [#allocation11], 4
          %s305 = int_to_ptr.vmem [resolvable:$true] %s304
          %310 = dma.hbm_to_vmem [thread:$0]  %s5, 256, %s305, [#allocation12], 64, 64, 4
        $region32: #{tpu_custom_call.1} parent=11 // pred_fallthru
          _
        // Predicated region
        $region33: #{tpu_custom_call.1} parent=11 // pred_check
          %p311 = pneg %p190
        $region34: #{tpu_custom_call.1} parent=11 // pred_check_branch
          %313 = sbr.rel (%p311) target = $region36
        $region35: #{tpu_custom_call.1} parent=11 // pred_region
          %s315 = ssub.s32 16, 16
          %316 = vsyncadd [#allocation12], %s315
          %s318 = sshll.u32 [#allocation13], 4
          %s319 = int_to_ptr.vmem [resolvable:$true] %s318
          %321 = dma.hbm_to_vmem [thread:$0]  %s6, 16, %s319, [#allocation12]
        $region36: #{tpu_custom_call.1} parent=11 // pred_fallthru
          _
        // Predicated region
        $region37: #{tpu_custom_call.1} parent=11 // pred_check
          %p322 = pneg %p211
        $region38: #{tpu_custom_call.1} parent=11 // pred_check_branch
          %324 = sbr.rel (%p322) target = $region40
        $region39: #{tpu_custom_call.1} parent=11 // pred_region
          %s326 = ssub.s32 16, 16
          %327 = vsyncadd [#allocation15], %s326
          %s329 = sshll.u32 [#allocation14], 4
          %s330 = int_to_ptr.vmem [resolvable:$true] %s329
          %332 = dma.hbm_to_vmem [thread:$0]  %s7, 16, %s330, [#allocation15]
        $region40: #{tpu_custom_call.1} parent=11 // pred_fallthru
          _
      $region12: #{tpu_custom_call.1} parent=5 // pred_fallthru
        _
      %p333 = scmp.lt.s32.totalorder %s24, 2
      // Predicated region
      $region41: #{tpu_custom_call.1} parent=5 // pred_check
        %p334 = pneg %p333
      $region42: #{tpu_custom_call.1} parent=5 // pred_check_branch
        %336 = sbr.rel (%p334) target = $region44
      $region43: #{tpu_custom_call.1} parent=5 // pred_region
        // Predicated region
        $region45: #{tpu_custom_call.1} parent=43 // pred_check
          %p337 = pneg %p58
        $region46: #{tpu_custom_call.1} parent=43 // pred_check_branch
          %339 = sbr.rel (%p337) target = $region48
        $region47: #{tpu_custom_call.1} parent=43 // pred_region
          %s340 = sand.u32 %s48, 1
          %s341 = scalar_lea.sflag [#allocation3], %s340
          %s342 = sand.u32 %s48, 1
          %s343 = smul.addr %s342, 8
          %s344 = scalar_lea.vmem [#allocation2], %s343
          %s346 = ssub.s32 128, 128
          %347 = vsyncadd %s341, %s346
          %s348 = sadd.s32 %s32, %s31
          %s349 = smul.addr %s348, 128
          %s350 = scalar_lea.hbm %s0, %s349
          %s352 = sshll.u32 %s344, 4
          %s353 = int_to_ptr.vmem [resolvable:$true] %s352
          %355 = dma.hbm_to_vmem [thread:$0]  %s350, 128, %s353, %s341
        $region48: #{tpu_custom_call.1} parent=43 // pred_fallthru
          _
      $region44: #{tpu_custom_call.1} parent=5 // pred_fallthru
        _
      %p356 = scmp.le.s32.totalorder 1, %s24
      %p357 = scmp.lt.s32.totalorder %s24, 3
      %p358 = pnand %p356, %p357
      %p359 = pneg %p358
      // Predicated region
      $region49: #{tpu_custom_call.1} parent=5 // pred_check
        _
      $region50: #{tpu_custom_call.1} parent=5 // pred_check_branch
        %361 = sbr.rel (%p358) target = $region52
      $region51: #{tpu_custom_call.1} parent=5 // pred_region
        %s362 = ssub.s32 %s24, 1
        %s363 = sand.u32 %s51, 1
        %s364 = scalar_lea.sflag [#allocation3], %s363
        %s365 = sand.u32 %s51, 1
        %s366 = smul.addr %s365, 8
        %s367 = scalar_lea.vmem [#allocation2], %s366
        // Predicated region
        $region53: #{tpu_custom_call.1} parent=51 // pred_check
          %p368 = pneg %p64
        $region54: #{tpu_custom_call.1} parent=51 // pred_check_branch
          %370 = sbr.rel (%p368) target = $region56
        $region55: #{tpu_custom_call.1} parent=51 // pred_region
          %371 = dma.done %s364, 128
        $region56: #{tpu_custom_call.1} parent=51 // pred_fallthru
          _
        // Predicated region
        $region57: #{tpu_custom_call.1} parent=51 // pred_check
          %p372 = pneg %p85
        $region58: #{tpu_custom_call.1} parent=51 // pred_check_branch
          %374 = sbr.rel (%p372) target = $region60
        $region59: #{tpu_custom_call.1} parent=51 // pred_region
          %375 = dma.done [#allocation6], 16
        $region60: #{tpu_custom_call.1} parent=51 // pred_fallthru
          _
        // Predicated region
        $region61: #{tpu_custom_call.1} parent=51 // pred_check
          %p376 = pneg %p106
        $region62: #{tpu_custom_call.1} parent=51 // pred_check_branch
          %378 = sbr.rel (%p376) target = $region64
        $region63: #{tpu_custom_call.1} parent=51 // pred_region
          %379 = dma.done [#allocation6], 16
        $region64: #{tpu_custom_call.1} parent=51 // pred_fallthru
          _
        // Predicated region
        $region65: #{tpu_custom_call.1} parent=51 // pred_check
          %p380 = pneg %p127
        $region66: #{tpu_custom_call.1} parent=51 // pred_check_branch
          %382 = sbr.rel (%p380) target = $region68
        $region67: #{tpu_custom_call.1} parent=51 // pred_region
          %383 = dma.done [#allocation9], 16
        $region68: #{tpu_custom_call.1} parent=51 // pred_fallthru
          _
        // Predicated region
        $region69: #{tpu_custom_call.1} parent=51 // pred_check
          %p384 = pneg %p148
        $region70: #{tpu_custom_call.1} parent=51 // pred_check_branch
          %386 = sbr.rel (%p384) target = $region72
        $region71: #{tpu_custom_call.1} parent=51 // pred_region
          %387 = dma.done [#allocation9], 16
        $region72: #{tpu_custom_call.1} parent=51 // pred_fallthru
          _
        // Predicated region
        $region73: #{tpu_custom_call.1} parent=51 // pred_check
          %p388 = pneg %p169
        $region74: #{tpu_custom_call.1} parent=51 // pred_check_branch
          %390 = sbr.rel (%p388) target = $region76
        $region75: #{tpu_custom_call.1} parent=51 // pred_region
          %391 = dma.done [#allocation12], 256
        $region76: #{tpu_custom_call.1} parent=51 // pred_fallthru
          _
        // Predicated region
        $region77: #{tpu_custom_call.1} parent=51 // pred_check
          %p392 = pneg %p190
        $region78: #{tpu_custom_call.1} parent=51 // pred_check_branch
          %394 = sbr.rel (%p392) target = $region80
        $region79: #{tpu_custom_call.1} parent=51 // pred_region
          %395 = dma.done [#allocation12], 16
        $region80: #{tpu_custom_call.1} parent=51 // pred_fallthru
          _
        // Predicated region
        $region81: #{tpu_custom_call.1} parent=51 // pred_check
          %p396 = pneg %p211
        $region82: #{tpu_custom_call.1} parent=51 // pred_check_branch
          %398 = sbr.rel (%p396) target = $region84
        $region83: #{tpu_custom_call.1} parent=51 // pred_region
          %399 = dma.done [#allocation15], 16
        $region84: #{tpu_custom_call.1} parent=51 // pred_fallthru
          _
        %s400 = sand.u32 %s51, 1
        %s401 = scalar_lea.sflag [#allocation3], %s400
        %s402 = sand.u32 %s51, 1
        %s403 = smul.addr %s402, 8
        %s404 = scalar_lea.vmem [#allocation2], %s403
        %p405 = pneg %p64
        %p406 = pneg %p61
        %p407 = pneg %p85
        %p408 = pneg %p82
        %p409 = pneg %p106
        %p410 = pneg %p103
        %p411 = pneg %p127
        %p412 = pneg %p124
        %p413 = pneg %p148
        %p414 = pneg %p145
        %p415 = pneg %p169
        %p416 = pneg %p166
        %p417 = pneg %p190
        %p418 = pneg %p187
        %p419 = pneg %p211
        %p420 = pneg %p208
        %p421 = pneg %p239
        %p422 = pneg %p236
        %s423 = sand.u32 %s226, 1
        %s424 = scalar_lea.sflag [#allocation4], %s423
        %s425 = sand.u32 %s226, 1
        %s426 = smul.addr %s425, 4
        %s427 = scalar_lea.vmem [#allocation16], %s426
        %v429 = vld [vmem:[%s367] sm:$0xff]
        %v430 = vld [vmem:[#allocation5] sm:$0x1]
        %v431 = vld [vmem:[#allocation7] sm:$0x1]
        %vm432 = vcmask 261120
        %v433 = vsel %vm432, %v429, 0.0
        %434 = vadd.xlane.f32.xlu0 %v433
        %v435 = vpop.xlane.xlu0 %434
        %v436 = vrcp.pop 32.0
        %v437 = vmul.f32 %v435, %v436
        %v438 = vsub.f32 %v429, %v437
        %v439 = vmul.f32 %v438, %v438
        %v440 = vsel %vm432, %v439, 0.0
        %441 = vadd.xlane.f32.xlu0 %v440
        %v442 = vpop.xlane.xlu0 %441
        %v443 = vmul.f32 %v442, %v436
        %v444 = vadd.f32 %v443, 1e-05
        %v445 = vrsqrt.pop %v444
        %v446 = vmul.f32 %v438, %v445
        %v448 = vlaneseq
        %v449 = vshrl.u32 %v448, 7
        %v450 = vsub.s32 0, %v449
        %v451 = vrot.slane %v430, %v450
        %v453 = vmul.f32 %v446, %v451
        %v455 = vlaneseq
        %v456 = vshrl.u32 %v455, 7
        %v457 = vsub.s32 0, %v456
        %v458 = vrot.slane %v431, %v457
        %v460 = vadd.f32 %v453, %v458
        %v461 = vld [vmem:[#allocation8] sm:$0x1]
        %v463 = vlaneseq
        %v464 = vshrl.u32 %v463, 7
        %v465 = vsub.s32 0, %v464
        %v466 = vrot.slane %v461, %v465
        %v468 = vmul.f32 %v460, %v466
        %v469 = vld [vmem:[#allocation10] sm:$0x1]
        %v471 = vlaneseq
        %v472 = vshrl.u32 %v471, 7
        %v473 = vsub.s32 0, %v472
        %v474 = vrot.slane %v469, %v473
        %v476 = vadd.f32 %v468, %v474
        %v477 = vpack.c.bf16 %v476, %v476
        %v478 = vld [vmem:[#allocation11] sm:$0xf]
        %v479 = vld [vmem:[#allocation11 + $0x4] sm:$0xf]
        %v480 = vld [vmem:[#allocation11 + $0x8] sm:$0xf]
        %v481 = vld [vmem:[#allocation11 + $0xc] sm:$0xf]
        %v486 = vunpack.c.l.b16 %v478
        %v487 = vunpack.c.l.b16 %v479
        %v488 = vunpack.c.l.b16 %v480
        %v489 = vunpack.c.l.b16 %v481
        %v490 = vpack.c.b16 %v487, %v486
        %v491 = vpack.c.b16 %v489, %v488
        %v495 = vsel %vm432, %v477, 0
        %497 = vmatprep.subr.bf16.mxu0 0
        %498 = vmatpush1.bf16.msra.mxu0 %v490
        %499 = vmatprep.subr.bf16.mxu0 0
        %500 = vmatpush1.bf16.msra.mxu0 %v491
        %501 = vmatprep.subr.bf16.mxu0 0
        %502 = vmatpush1.bf16.msra.mxu0 0
        %503 = vmatprep.subr.bf16.mxu0 0
        %504 = vmatpush1.bf16.msra.mxu0 0
        %505 = vmatprep.subr.bf16.mxu0 0
        %506 = vmatpush1.bf16.msra.mxu0 0
        %507 = vmatprep.subr.bf16.mxu0 0
        %508 = vmatpush1.bf16.msra.mxu0 0
        %509 = vmatprep.subr.bf16.mxu0 0
        %510 = vmatpush1.bf16.msra.mxu0 0
        %511 = vmatprep.subr.bf16.mxu0 0
        %512 = vmatpush1.bf16.msra.mxu0 0
        %513 = vmatprep.subr.bf16.mxu0 0
        %514 = vmatpush1.bf16.msra.mxu0 0
        %515 = vmatprep.subr.bf16.mxu0 0
        %516 = vmatpush1.bf16.msra.mxu0 0
        %517 = vmatprep.subr.bf16.mxu0 0
        %518 = vmatpush1.bf16.msra.mxu0 0
        %519 = vmatprep.subr.bf16.mxu0 0
        %520 = vmatpush1.bf16.msra.mxu0 0
        %521 = vmatprep.subr.bf16.mxu0 0
        %522 = vmatpush1.bf16.msra.mxu0 0
        %523 = vmatprep.subr.bf16.mxu0 0
        %524 = vmatpush1.bf16.msra.mxu0 0
        %525 = vmatprep.subr.bf16.mxu0 0
        %526 = vmatpush1.bf16.msra.mxu0 0
        %527 = vmatprep.subr.bf16.mxu0 0
        %528 = vmatpush1.bf16.msra.mxu0 0
        %529 = vmatprep.mubr.bf16.mxu0 0
        %530 = vmatmul.mubr.bf16.gmra.mrb[0].mxu0 %v495
        %v531 = vpop.f32.mrb[0].mxu0
        %v532 = vadd.f32 0.0, %v531
        %v533 = vpop.f32.mrb[0].mxu0
        %v534 = vpop.f32.mrb[0].mxu0
        %v535 = vpop.f32.mrb[0].mxu0
        %536 = vdwg.mxu0
        %v537 = vld [vmem:[#allocation13] sm:$0x1]
        %v539 = vlaneseq
        %v540 = vshrl.u32 %v539, 7
        %v541 = vsub.s32 0, %v540
        %v542 = vrot.slane %v537, %v541
        %v544 = vmul.f32 %v532, %v542
        %v545 = vld [vmem:[#allocation14] sm:$0x1]
        %v547 = vlaneseq
        %v548 = vshrl.u32 %v547, 7
        %v549 = vsub.s32 0, %v548
        %v550 = vrot.slane %v545, %v549
        %v552 = vadd.f32 %v544, %v550
        %v553 = vpack.c.bf16 %v552, %v552
        %vm554 = vcmask 781312
        %555 = vst.msk [vmem:[%s427] sm:$0xf] %vm554, %v553
        %s556 = sand.u32 %s226, 1
        %s557 = scalar_lea.sflag [#allocation4], %s556
        %s558 = sand.u32 %s226, 1
        %s559 = smul.addr %s558, 4
        %s560 = scalar_lea.vmem [#allocation16], %s559
        // Predicated region
        $region85: #{tpu_custom_call.1} parent=51 // pred_check
          %p561 = pneg %p236
        $region86: #{tpu_custom_call.1} parent=51 // pred_check_branch
          %563 = sbr.rel (%p561) target = $region88
        $region87: #{tpu_custom_call.1} parent=51 // pred_region
          %s565 = ssub.s32 64, 64
          %566 = vsyncadd %s557, %s565
          %s567 = sadd.s32 %s34, %s33
          %s568 = smul.addr %s567, 64
          %s569 = scalar_lea.hbm %s8, %s568
          %s571 = sshll.u32 %s560, 4
          %s572 = int_to_ptr.vmem [resolvable:$true] %s571
          %574 = dma.vmem_to_hbm [thread:$0]  %s572, 64, %s569, %s557
        $region88: #{tpu_custom_call.1} parent=51 // pred_fallthru
          _
      $region52: #{tpu_custom_call.1} parent=5 // pred_fallthru
        _
      %p575 = scmp.le.s32.totalorder 2, %s24
      // Predicated region
      $region89: #{tpu_custom_call.1} parent=5 // pred_check
        %p576 = pneg %p575
      $region90: #{tpu_custom_call.1} parent=5 // pred_check_branch
        %578 = sbr.rel (%p576) target = $region92
      $region91: #{tpu_custom_call.1} parent=5 // pred_region
        %s579 = ssub.s32 %s24, 2
        // Predicated region
        $region93: #{tpu_custom_call.1} parent=91 // pred_check
          %p580 = pneg %p242
        $region94: #{tpu_custom_call.1} parent=91 // pred_check_branch
          %582 = sbr.rel (%p580) target = $region96
        $region95: #{tpu_custom_call.1} parent=91 // pred_region
          %s583 = sand.u32 %s227, 1
          %s584 = scalar_lea.sflag [#allocation4], %s583
          %s585 = sand.u32 %s227, 1
          %s586 = smul.addr %s585, 4
          %s587 = scalar_lea.vmem [#allocation16], %s586
          %588 = dma.done %s584, 64
        $region96: #{tpu_custom_call.1} parent=91 // pred_fallthru
          _
      $region92: #{tpu_custom_call.1} parent=5 // pred_fallthru
        _
    $region6: #{tpu_custom_call.1} parent=1 // loop_footer
      %s28 = sadd.s32 1, %s24
    $region7: #{tpu_custom_call.1} parent=1 // loop_footer_branch
      %23 = sbr.rel target = $region3
    $region8: #{tpu_custom_call.1} parent=1 // loop_exit
      _
    %589 = vsyncpa [#allocation3], 1
    %s590 = scalar_lea.sflag [#allocation3], 1
    %591 = vsyncpa %s590, 1
    %592 = vsyncpa [#allocation6], 1
    %593 = vsyncpa [#allocation9], 1
    %594 = vsyncpa [#allocation12], 1
    %595 = vsyncpa [#allocation15], 1
    %596 = vsyncpa [#allocation4], 1
    %s597 = scalar_lea.sflag [#allocation4], 1
    %598 = vsyncpa %s597, 1

// kernel: tpu_custom_call.1
$region0: #{tpu_custom_call.1}
  #allocation0 [shape = 'u32[]', space=smem, size = 0x4, offset = 0x4, fixed_abs, tag = 'smem constant byte address 0x4 - core index']
  #allocation1 [shape = 'u32[144,128]{1,0:T(1,128)}', space=vmem, size = 0x12000, scoped, tag = 'internal scratch']
  %s0 = inlined_call_operand.hbm [shape: f32[2,8,32], index: 0, kind: input, shape index: {}]
  %s1 = inlined_call_operand.hbm [shape: f32[1,32], index: 1, kind: input, shape index: {}]
  %s2 = inlined_call_operand.hbm [shape: f32[1,32], index: 2, kind: input, shape index: {}]
  %s3 = inlined_call_operand.hbm [shape: f32[1,32], index: 3, kind: input, shape index: {}]
  %s4 = inlined_call_operand.hbm [shape: f32[1,32], index: 4, kind: input, shape index: {}]
  %s5 = inlined_call_operand.hbm [shape: bf16[32,96], index: 5, kind: input, shape index: {}]
  %s6 = inlined_call_operand.hbm [shape: f32[1,96], index: 6, kind: input, shape index: {}]
  %s7 = inlined_call_operand.hbm [shape: f32[1,96], index: 7, kind: input, shape index: {}]
  %s8 = inlined_call_operand.hbm [shape: bf16[2,8,96], index: 8, kind: output, shape index: {}]
  %s9 = sld [smem:[#allocation0]]
  $region97: #{tpu_custom_call.1} parent=0
    _
  %s11 = ssub.s32 1, %s9
  %s12 = scalar_select 0, %s11, %s9
  $region1: #{tpu_custom_call.1} parent=0
    #allocation2 [shape = 'u8[8192]{0}', space=vmem, size = 0x2000, scoped, tag = 'input window, operand 0']
    #allocation3 [shape = 's32[2]{0}', space=sflag, size = 0x8, scoped, tag = 'scoped memory for tpu_custom_call.1']
    #allocation4 [shape = 's32[2]{0}', space=sflag, size = 0x8, scoped, tag = 'scoped memory for tpu_custom_call.1']
    #allocation5 [shape = 'u8[512]{0}', space=vmem, size = 0x400, scoped, tag = 'input window, operand 1, single buffered']
    #allocation6 [shape = 's32[1]{0}', space=sflag, size = 0x4, scoped, tag = 'scoped memory for tpu_custom_call.1']
    #allocation7 [shape = 'u8[512]{0}', space=vmem, size = 0x400, scoped, tag = 'input window, operand 2, single buffered']
    #allocation8 [shape = 'u8[512]{0}', space=vmem, size = 0x400, scoped, tag = 'input window, operand 3, single buffered']
    #allocation9 [shape = 's32[1]{0}', space=sflag, size = 0x4, scoped, tag = 'scoped memory for tpu_custom_call.1']
    #allocation10 [shape = 'u8[512]{0}', space=vmem, size = 0x400, scoped, tag = 'input window, operand 4, single buffered']
    #allocation11 [shape = 'u8[8192]{0}', space=vmem, size = 0x2000, scoped, tag = 'input window, operand 5, single buffered']
    #allocation12 [shape = 's32[1]{0}', space=sflag, size = 0x4, scoped, tag = 'scoped memory for tpu_custom_call.1']
    #allocation13 [shape = 'u8[512]{0}', space=vmem, size = 0x400, scoped, tag = 'input window, operand 6, single buffered']
    #allocation14 [shape = 'u8[512]{0}', space=vmem, size = 0x400, scoped, tag = 'input window, operand 7, single buffered']
    #allocation15 [shape = 's32[1]{0}', space=sflag, size = 0x4, scoped, tag = 'scoped memory for tpu_custom_call.1']
    #allocation16 [shape = 'u8[4096]{0}', space=vmem, size = 0x1000, scoped, tag = 'output window, operand 0']
    %13 = vsyncpa [#allocation3], 0
    %s14 = scalar_lea.sflag [#allocation3], 1
    %15 = vsyncpa %s14, 0
    %16 = vsyncpa [#allocation6], 0
    %17 = vsyncpa [#allocation9], 0
    %18 = vsyncpa [#allocation12], 0
    %19 = vsyncpa [#allocation15], 0
    %20 = vsyncpa [#allocation4], 0
    %s21 = scalar_lea.sflag [#allocation4], 1
    %22 = vsyncpa %s21, 0
    loop: start=0, step=1, limit=4
    $region2: #{tpu_custom_call.1} parent=1 // loop_pre_header
      _
    $region3: #{tpu_custom_call.1} parent=1 // loop_header
      %s24 = sphi 0, %s28
      %p25 = scmp.ge.s32.totalorder %s24, 4
      %s31 = sphi 0, %s43
      %s32 = sphi 0, %s39
      %s33 = sphi 0, %s31
      %s34 = sphi 0, %s32
      %s35 = sphi 0, %s33
      %s36 = sphi 0, %s34
      %s48 = sphi 0, %s50
      %s51 = sphi 0, %s48
      %s52 = sphi 0, %s51
      %s68 = sphi 0, %s52
      %s72 = sphi 0, %s72
      %s74 = sphi 0, %s72
      %s75 = sphi 0, %s74
      %s89 = sphi 0, %s75
      %s93 = sphi 0, %s93
      %s95 = sphi 0, %s93
      %s96 = sphi 0, %s95
      %s110 = sphi 0, %s96
      %s114 = sphi 0, %s114
      %s116 = sphi 0, %s114
      %s117 = sphi 0, %s116
      %s131 = sphi 0, %s117
      %s135 = sphi 0, %s135
      %s137 = sphi 0, %s135
      %s138 = sphi 0, %s137
      %s152 = sphi 0, %s138
      %s156 = sphi 0, %s156
      %s158 = sphi 0, %s156
      %s159 = sphi 0, %s158
      %s173 = sphi 0, %s159
      %s177 = sphi 0, %s177
      %s179 = sphi 0, %s177
      %s180 = sphi 0, %s179
      %s194 = sphi 0, %s180
      %s198 = sphi 0, %s198
      %s200 = sphi 0, %s198
      %s201 = sphi 0, %s200
      %s215 = sphi 0, %s201
      %s223 = sphi 0, %s225
      %s226 = sphi 0, %s223
      %s227 = sphi 0, %s226
      %s243 = sphi 0, %s227
    $region4: #{tpu_custom_call.1} parent=1 // loop_header_branch
      %27 = sbr.rel (%p25) target = $region8
    $region5: #{tpu_custom_call.1} parent=1 // loop_body
      %s29 = ssub.s32 %s24, 1
      %s30 = ssub.s32 %s24, 2
      %s37 = sadd.s32 1, %s32
      %p38 = scmp.ge.s32.totalorder %s37, 1
      %s39 = scalar_select %p38, 0, %s37
      %s40 = sadd.s32 1, %s31
      %s41 = scalar_select %p38, %s40, %s31
      %p42 = scmp.ge.s32.totalorder %s41, 2
      %s43 = scalar_select %p42, 0, %s41
      %s44 = ssub.s32 %s31, %s43
      %s45 = ssub.s32 %s32, %s39
      %s46 = sor.u32 %s44, %s45
      %p47 = scmp.eq.s32.totalorder %s46, 0
      %s49 = sadd.s32 %s48, 1
      %s50 = scalar_select %p47, %s48, %s49
      %p53 = pneg %p47
      %p54 = scmp.eq.s32.totalorder %s24, 1
      %p55 = por %p53, %p54
      %p56 = scmp.ne.s32.totalorder %s48, %s51
      %p57 = scmp.eq.s32.totalorder %s24, 0
      %p58 = por %p56, %p57
      %p59 = scmp.ne.s32.totalorder %s48, %s51
      %p60 = scmp.eq.s32.totalorder %s29, 1
      %p61 = por %p59, %p60
      %p62 = scmp.ne.s32.totalorder %s51, %s52
      %p63 = scmp.eq.s32.totalorder %s29, 0
      %p64 = por %p62, %p63
      %p65 = scmp.ne.s32.totalorder %s51, %s52
      %p66 = scmp.eq.s32.totalorder %s30, 1
      %p67 = por %p65, %p66
      %p69 = scmp.ne.s32.totalorder %s52, %s68
      %p70 = scmp.eq.s32.totalorder %s30, 0
      %p71 = por %p69, %p70
      %s73 = sadd.s32 %s72, 1
      %p76 = scmp.eq.s32.totalorder %s24, 1
      %p77 = scmp.ne.s32.totalorder %s72, %s74
      %p78 = scmp.eq.s32.totalorder %s24, 0
      %p79 = por %p77, %p78
      %p80 = scmp.ne.s32.totalorder %s72, %s74
      %p81 = scmp.eq.s32.totalorder %s29, 1
      %p82 = por %p80, %p81
      %p83 = scmp.ne.s32.totalorder %s74, %s75
      %p84 = scmp.eq.s32.totalorder %s29, 0
      %p85 = por %p83, %p84
      %p86 = scmp.ne.s32.totalorder %s74, %s75
      %p87 = scmp.eq.s32.totalorder %s30, 1
      %p88 = por %p86, %p87
      %p90 = scmp.ne.s32.totalorder %s75, %s89
      %p91 = scmp.eq.s32.totalorder %s30, 0
      %p92 = por %p90, %p91
      %s94 = sadd.s32 %s93, 1
      %p97 = scmp.eq.s32.totalorder %s24, 1
      %p98 = scmp.ne.s32.totalorder %s93, %s95
      %p99 = scmp.eq.s32.totalorder %s24, 0
      %p100 = por %p98, %p99
      %p101 = scmp.ne.s32.totalorder %s93, %s95
      %p102 = scmp.eq.s32.totalorder %s29, 1
      %p103 = por %p101, %p102
      %p104 = scmp.ne.s32.totalorder %s95, %s96
      %p105 = scmp.eq.s32.totalorder %s29, 0
      %p106 = por %p104, %p105
      %p107 = scmp.ne.s32.totalorder %s95, %s96
      %p108 = scmp.eq.s32.totalorder %s30, 1
      %p109 = por %p107, %p108
      %p111 = scmp.ne.s32.totalorder %s96, %s110
      %p112 = scmp.eq.s32.totalorder %s30, 0
      %p113 = por %p111, %p112
      %s115 = sadd.s32 %s114, 1
      %p118 = scmp.eq.s32.totalorder %s24, 1
      %p119 = scmp.ne.s32.totalorder %s114, %s116
      %p120 = scmp.eq.s32.totalorder %s24, 0
      %p121 = por %p119, %p120
      %p122 = scmp.ne.s32.totalorder %s114, %s116
      %p123 = scmp.eq.s32.totalorder %s29, 1
      %p124 = por %p122, %p123
      %p125 = scmp.ne.s32.totalorder %s116, %s117
      %p126 = scmp.eq.s32.totalorder %s29, 0
      %p127 = por %p125, %p126
      %p128 = scmp.ne.s32.totalorder %s116, %s117
      %p129 = scmp.eq.s32.totalorder %s30, 1
      %p130 = por %p128, %p129
      %p132 = scmp.ne.s32.totalorder %s117, %s131
      %p133 = scmp.eq.s32.totalorder %s30, 0
      %p134 = por %p132, %p133
      %s136 = sadd.s32 %s135, 1
      %p139 = scmp.eq.s32.totalorder %s24, 1
      %p140 = scmp.ne.s32.totalorder %s135, %s137
      %p141 = scmp.eq.s32.totalorder %s24, 0
      %p142 = por %p140, %p141
      %p143 = scmp.ne.s32.totalorder %s135, %s137
      %p144 = scmp.eq.s32.totalorder %s29, 1
      %p145 = por %p143, %p144
      %p146 = scmp.ne.s32.totalorder %s137, %s138
      %p147 = scmp.eq.s32.totalorder %s29, 0
      %p148 = por %p146, %p147
      %p149 = scmp.ne.s32.totalorder %s137, %s138
      %p150 = scmp.eq.s32.totalorder %s30, 1
      %p151 = por %p149, %p150
      %p153 = scmp.ne.s32.totalorder %s138, %s152
      %p154 = scmp.eq.s32.totalorder %s30, 0
      %p155 = por %p153, %p154
      %s157 = sadd.s32 %s156, 1
      %p160 = scmp.eq.s32.totalorder %s24, 1
      %p161 = scmp.ne.s32.totalorder %s156, %s158
      %p162 = scmp.eq.s32.totalorder %s24, 0
      %p163 = por %p161, %p162
      %p164 = scmp.ne.s32.totalorder %s156, %s158
      %p165 = scmp.eq.s32.totalorder %s29, 1
      %p166 = por %p164, %p165
      %p167 = scmp.ne.s32.totalorder %s158, %s159
      %p168 = scmp.eq.s32.totalorder %s29, 0
      %p169 = por %p167, %p168
      %p170 = scmp.ne.s32.totalorder %s158, %s159
      %p171 = scmp.eq.s32.totalorder %s30, 1
      %p172 = por %p170, %p171
      %p174 = scmp.ne.s32.totalorder %s159, %s173
      %p175 = scmp.eq.s32.totalorder %s30, 0
      %p176 = por %p174, %p175
      %s178 = sadd.s32 %s177, 1
      %p181 = scmp.eq.s32.totalorder %s24, 1
      %p182 = scmp.ne.s32.totalorder %s177, %s179
      %p183 = scmp.eq.s32.totalorder %s24, 0
      %p184 = por %p182, %p183
      %p185 = scmp.ne.s32.totalorder %s177, %s179
      %p186 = scmp.eq.s32.totalorder %s29, 1
      %p187 = por %p185, %p186
      %p188 = scmp.ne.s32.totalorder %s179, %s180
      %p189 = scmp.eq.s32.totalorder %s29, 0
      %p190 = por %p188, %p189
      %p191 = scmp.ne.s32.totalorder %s179, %s180
      %p192 = scmp.eq.s32.totalorder %s30, 1
      %p193 = por %p191, %p192
      %p195 = scmp.ne.s32.totalorder %s180, %s194
      %p196 = scmp.eq.s32.totalorder %s30, 0
      %p197 = por %p195, %p196
      %s199 = sadd.s32 %s198, 1
      %p202 = scmp.eq.s32.totalorder %s24, 1
      %p203 = scmp.ne.s32.totalorder %s198, %s200
      %p204 = scmp.eq.s32.totalorder %s24, 0
      %p205 = por %p203, %p204
      %p206 = scmp.ne.s32.totalorder %s198, %s200
      %p207 = scmp.eq.s32.totalorder %s29, 1
      %p208 = por %p206, %p207
      %p209 = scmp.ne.s32.totalorder %s200, %s201
      %p210 = scmp.eq.s32.totalorder %s29, 0
      %p211 = por %p209, %p210
      %p212 = scmp.ne.s32.totalorder %s200, %s201
      %p213 = scmp.eq.s32.totalorder %s30, 1
      %p214 = por %p212, %p213
      %p216 = scmp.ne.s32.totalorder %s201, %s215
      %p217 = scmp.eq.s32.totalorder %s30, 0
      %p218 = por %p216, %p217
      %s219 = ssub.s32 %s31, %s43
      %s220 = ssub.s32 %s32, %s39
      %s221 = sor.u32 %s219, %s220
      %p222 = scmp.eq.s32.totalorder %s221, 0
      %s224 = sadd.s32 %s223, 1
      %s225 = scalar_select %p222, %s223, %s224
      %p228 = pneg %p222
      %p229 = scmp.eq.s32.totalorder %s24, 1
      %p230 = por %p228, %p229
      %p231 = scmp.ne.s32.totalorder %s223, %s226
      %p232 = scmp.eq.s32.totalorder %s24, 0
      %p233 = por %p231, %p232
      %p234 = scmp.ne.s32.totalorder %s223, %s226
      %p235 = scmp.eq.s32.totalorder %s29, 1
      %p236 = por %p234, %p235
      %p237 = scmp.ne.s32.totalorder %s226, %s227
      %p238 = scmp.eq.s32.totalorder %s29, 0
      %p239 = por %p237, %p238
      %p240 = scmp.ne.s32.totalorder %s226, %s227
      %p241 = scmp.eq.s32.totalorder %s30, 1
      %p242 = por %p240, %p241
      %p244 = scmp.ne.s32.totalorder %s227, %s243
      %p245 = scmp.eq.s32.totalorder %s30, 0
      %p246 = por %p244, %p245
      %p247 = scmp.le.s32.totalorder 1, %s24
      %p248 = scmp.lt.s32.totalorder %s24, 3
      %p249 = pnand %p247, %p248
      %p250 = pneg %p249
      // Predicated region
      $region9: #{tpu_custom_call.1} parent=5 // pred_check
        _
      $region10: #{tpu_custom_call.1} parent=5 // pred_check_branch
        %252 = sbr.rel (%p249) target = $region12
      $region11: #{tpu_custom_call.1} parent=5 // pred_region
        %s253 = ssub.s32 %s24, 1
        // Predicated region
        $region13: #{tpu_custom_call.1} parent=11 // pred_check
          %p254 = pneg %p85
        $region14: #{tpu_custom_call.1} parent=11 // pred_check_branch
          %256 = sbr.rel (%p254) target = $region16
        $region15: #{tpu_custom_call.1} parent=11 // pred_region
          %s258 = ssub.s32 16, 16
          %259 = vsyncadd [#allocation6], %s258
          %s261 = sshll.u32 [#allocation5], 4
          %s262 = int_to_ptr.vmem [resolvable:$true] %s261
          %264 = dma.hbm_to_vmem [thread:$0]  %s1, 16, %s262, [#allocation6]
        $region16: #{tpu_custom_call.1} parent=11 // pred_fallthru
          _
        // Predicated region
        $region17: #{tpu_custom_call.1} parent=11 // pred_check
          %p265 = pneg %p106
        $region18: #{tpu_custom_call.1} parent=11 // pred_check_branch
          %267 = sbr.rel (%p265) target = $region20
        $region19: #{tpu_custom_call.1} parent=11 // pred_region
          %s269 = ssub.s32 16, 16
          %270 = vsyncadd [#allocation6], %s269
          %s272 = sshll.u32 [#allocation7], 4
          %s273 = int_to_ptr.vmem [resolvable:$true] %s272
          %275 = dma.hbm_to_vmem [thread:$0]  %s2, 16, %s273, [#allocation6]
        $region20: #{tpu_custom_call.1} parent=11 // pred_fallthru
          _
        // Predicated region
        $region21: #{tpu_custom_call.1} parent=11 // pred_check
          %p276 = pneg %p127
        $region22: #{tpu_custom_call.1} parent=11 // pred_check_branch
          %278 = sbr.rel (%p276) target = $region24
        $region23: #{tpu_custom_call.1} parent=11 // pred_region
          %s280 = ssub.s32 16, 16
          %281 = vsyncadd [#allocation9], %s280
          %s283 = sshll.u32 [#allocation8], 4
          %s284 = int_to_ptr.vmem [resolvable:$true] %s283
          %286 = dma.hbm_to_vmem [thread:$0]  %s3, 16, %s284, [#allocation9]
        $region24: #{tpu_custom_call.1} parent=11 // pred_fallthru
          _
        // Predicated region
        $region25: #{tpu_custom_call.1} parent=11 // pred_check
          %p287 = pneg %p148
        $region26: #{tpu_custom_call.1} parent=11 // pred_check_branch
          %289 = sbr.rel (%p287) target = $region28
        $region27: #{tpu_custom_call.1} parent=11 // pred_region
          %s291 = ssub.s32 16, 16
          %292 = vsyncadd [#allocation9], %s291
          %s294 = sshll.u32 [#allocation10], 4
          %s295 = int_to_ptr.vmem [resolvable:$true] %s294
          %297 = dma.hbm_to_vmem [thread:$0]  %s4, 16, %s295, [#allocation9]
        $region28: #{tpu_custom_call.1} parent=11 // pred_fallthru
          _
        // Predicated region
        $region29: #{tpu_custom_call.1} parent=11 // pred_check
          %p298 = pneg %p169
        $region30: #{tpu_custom_call.1} parent=11 // pred_check_branch
          %300 = sbr.rel (%p298) target = $region32
        $region31: #{tpu_custom_call.1} parent=11 // pred_region
          %s302 = ssub.s32 256, 256
          %303 = vsyncadd [#allocation12], %s302
          %s304 = sshll.u32 [#allocation11], 4
          %s305 = int_to_ptr.vmem [resolvable:$true] %s304
          %310 = dma.hbm_to_vmem [thread:$0]  %s5, 256, %s305, [#allocation12], 64, 64, 4
        $region32: #{tpu_custom_call.1} parent=11 // pred_fallthru
          _
        // Predicated region
        $region33: #{tpu_custom_call.1} parent=11 // pred_check
          %p311 = pneg %p190
        $region34: #{tpu_custom_call.1} parent=11 // pred_check_branch
          %313 = sbr.rel (%p311) target = $region36
        $region35: #{tpu_custom_call.1} parent=11 // pred_region
          %s315 = ssub.s32 16, 16
          %316 = vsyncadd [#allocation12], %s315
          %s318 = sshll.u32 [#allocation13], 4
          %s319 = int_to_ptr.vmem [resolvable:$true] %s318
          %321 = dma.hbm_to_vmem [thread:$0]  %s6, 16, %s319, [#allocation12]
        $region36: #{tpu_custom_call.1} parent=11 // pred_fallthru
          _
        // Predicated region
        $region37: #{tpu_custom_call.1} parent=11 // pred_check
          %p322 = pneg %p211
        $region38: #{tpu_custom_call.1} parent=11 // pred_check_branch
          %324 = sbr.rel (%p322) target = $region40
        $region39: #{tpu_custom_call.1} parent=11 // pred_region
          %s326 = ssub.s32 16, 16
          %327 = vsyncadd [#allocation15], %s326
          %s329 = sshll.u32 [#allocation14], 4
          %s330 = int_to_ptr.vmem [resolvable:$true] %s329
          %332 = dma.hbm_to_vmem [thread:$0]  %s7, 16, %s330, [#allocation15]
        $region40: #{tpu_custom_call.1} parent=11 // pred_fallthru
          _
      $region12: #{tpu_custom_call.1} parent=5 // pred_fallthru
        _
      %p333 = scmp.lt.s32.totalorder %s24, 2
      // Predicated region
      $region41: #{tpu_custom_call.1} parent=5 // pred_check
        %p334 = pneg %p333
      $region42: #{tpu_custom_call.1} parent=5 // pred_check_branch
        %336 = sbr.rel (%p334) target = $region44
      $region43: #{tpu_custom_call.1} parent=5 // pred_region
        // Predicated region
        $region45: #{tpu_custom_call.1} parent=43 // pred_check
          %p337 = pneg %p58
        $region46: #{tpu_custom_call.1} parent=43 // pred_check_branch
          %339 = sbr.rel (%p337) target = $region48
        $region47: #{tpu_custom_call.1} parent=43 // pred_region
          %s340 = sand.u32 %s48, 1
          %s341 = scalar_lea.sflag [#allocation3], %s340
          %s342 = sand.u32 %s48, 1
          %s343 = smul.addr %s342, 8
          %s344 = scalar_lea.vmem [#allocation2], %s343
          %s346 = ssub.s32 128, 128
          %347 = vsyncadd %s341, %s346
          %s348 = sadd.s32 %s32, %s31
          %s349 = smul.addr %s348, 128
          %s350 = scalar_lea.hbm %s0, %s349
          %s352 = sshll.u32 %s344, 4
          %s353 = int_to_ptr.vmem [resolvable:$true] %s352
          %355 = dma.hbm_to_vmem [thread:$0]  %s350, 128, %s353, %s341
        $region48: #{tpu_custom_call.1} parent=43 // pred_fallthru
          _
      $region44: #{tpu_custom_call.1} parent=5 // pred_fallthru
        _
      %p356 = scmp.le.s32.totalorder 1, %s24
      %p357 = scmp.lt.s32.totalorder %s24, 3
      %p358 = pnand %p356, %p357
      %p359 = pneg %p358
      // Predicated region
      $region49: #{tpu_custom_call.1} parent=5 // pred_check
        _
      $region50: #{tpu_custom_call.1} parent=5 // pred_check_branch
        %361 = sbr.rel (%p358) target = $region52
      $region51: #{tpu_custom_call.1} parent=5 // pred_region
        %s362 = ssub.s32 %s24, 1
        %s363 = sand.u32 %s51, 1
        %s364 = scalar_lea.sflag [#allocation3], %s363
        %s365 = sand.u32 %s51, 1
        %s366 = smul.addr %s365, 8
        %s367 = scalar_lea.vmem [#allocation2], %s366
        // Predicated region
        $region53: #{tpu_custom_call.1} parent=51 // pred_check
          %p368 = pneg %p64
        $region54: #{tpu_custom_call.1} parent=51 // pred_check_branch
          %370 = sbr.rel (%p368) target = $region56
        $region55: #{tpu_custom_call.1} parent=51 // pred_region
          %371 = dma.done %s364, 128
        $region56: #{tpu_custom_call.1} parent=51 // pred_fallthru
          _
        // Predicated region
        $region57: #{tpu_custom_call.1} parent=51 // pred_check
          %p372 = pneg %p85
        $region58: #{tpu_custom_call.1} parent=51 // pred_check_branch
          %374 = sbr.rel (%p372) target = $region60
        $region59: #{tpu_custom_call.1} parent=51 // pred_region
          %375 = dma.done [#allocation6], 16
        $region60: #{tpu_custom_call.1} parent=51 // pred_fallthru
          _
        // Predicated region
        $region61: #{tpu_custom_call.1} parent=51 // pred_check
          %p376 = pneg %p106
        $region62: #{tpu_custom_call.1} parent=51 // pred_check_branch
          %378 = sbr.rel (%p376) target = $region64
        $region63: #{tpu_custom_call.1} parent=51 // pred_region
          %379 = dma.done [#allocation6], 16
        $region64: #{tpu_custom_call.1} parent=51 // pred_fallthru
          _
        // Predicated region
        $region65: #{tpu_custom_call.1} parent=51 // pred_check
          %p380 = pneg %p127
        $region66: #{tpu_custom_call.1} parent=51 // pred_check_branch
          %382 = sbr.rel (%p380) target = $region68
        $region67: #{tpu_custom_call.1} parent=51 // pred_region
          %383 = dma.done [#allocation9], 16
        $region68: #{tpu_custom_call.1} parent=51 // pred_fallthru
          _
        // Predicated region
        $region69: #{tpu_custom_call.1} parent=51 // pred_check
          %p384 = pneg %p148
        $region70: #{tpu_custom_call.1} parent=51 // pred_check_branch
          %386 = sbr.rel (%p384) target = $region72
        $region71: #{tpu_custom_call.1} parent=51 // pred_region
          %387 = dma.done [#allocation9], 16
        $region72: #{tpu_custom_call.1} parent=51 // pred_fallthru
          _
        // Predicated region
        $region73: #{tpu_custom_call.1} parent=51 // pred_check
          %p388 = pneg %p169
        $region74: #{tpu_custom_call.1} parent=51 // pred_check_branch
          %390 = sbr.rel (%p388) target = $region76
        $region75: #{tpu_custom_call.1} parent=51 // pred_region
          %391 = dma.done [#allocation12], 256
        $region76: #{tpu_custom_call.1} parent=51 // pred_fallthru
          _
        // Predicated region
        $region77: #{tpu_custom_call.1} parent=51 // pred_check
          %p392 = pneg %p190
        $region78: #{tpu_custom_call.1} parent=51 // pred_check_branch
          %394 = sbr.rel (%p392) target = $region80
        $region79: #{tpu_custom_call.1} parent=51 // pred_region
          %395 = dma.done [#allocation12], 16
        $region80: #{tpu_custom_call.1} parent=51 // pred_fallthru
          _
        // Predicated region
        $region81: #{tpu_custom_call.1} parent=51 // pred_check
          %p396 = pneg %p211
        $region82: #{tpu_custom_call.1} parent=51 // pred_check_branch
          %398 = sbr.rel (%p396) target = $region84
        $region83: #{tpu_custom_call.1} parent=51 // pred_region
          %399 = dma.done [#allocation15], 16
        $region84: #{tpu_custom_call.1} parent=51 // pred_fallthru
          _
        %s400 = sand.u32 %s51, 1
        %s401 = scalar_lea.sflag [#allocation3], %s400
        %s402 = sand.u32 %s51, 1
        %s403 = smul.addr %s402, 8
        %s404 = scalar_lea.vmem [#allocation2], %s403
        %p405 = pneg %p64
        %p406 = pneg %p61
        %p407 = pneg %p85
        %p408 = pneg %p82
        %p409 = pneg %p106
        %p410 = pneg %p103
        %p411 = pneg %p127
        %p412 = pneg %p124
        %p413 = pneg %p148
        %p414 = pneg %p145
        %p415 = pneg %p169
        %p416 = pneg %p166
        %p417 = pneg %p190
        %p418 = pneg %p187
        %p419 = pneg %p211
        %p420 = pneg %p208
        %p421 = pneg %p239
        %p422 = pneg %p236
        %s423 = sand.u32 %s226, 1
        %s424 = scalar_lea.sflag [#allocation4], %s423
        %s425 = sand.u32 %s226, 1
        %s426 = smul.addr %s425, 4
        %s427 = scalar_lea.vmem [#allocation16], %s426
        %v429 = vld [vmem:[%s367] sm:$0xff]
        %v430 = vld [vmem:[#allocation5] sm:$0x1]
        %v431 = vld [vmem:[#allocation7] sm:$0x1]
        %vm432 = vcmask 261120
        %v433 = vsel %vm432, %v429, 0.0
        %434 = vadd.xlane.f32.xlu0 %v433
        %v435 = vpop.xlane.xlu0 %434
        %v436 = vrcp.pop 32.0
        %v437 = vmul.f32 %v435, %v436
        %v438 = vsub.f32 %v429, %v437
        %v439 = vmul.f32 %v438, %v438
        %v440 = vsel %vm432, %v439, 0.0
        %441 = vadd.xlane.f32.xlu0 %v440
        %v442 = vpop.xlane.xlu0 %441
        %v443 = vmul.f32 %v442, %v436
        %v444 = vadd.f32 %v443, 1e-05
        %v445 = vrsqrt.pop %v444
        %v446 = vmul.f32 %v438, %v445
        %v448 = vlaneseq
        %v449 = vshrl.u32 %v448, 7
        %v450 = vsub.s32 0, %v449
        %v451 = vrot.slane %v430, %v450
        %v453 = vmul.f32 %v446, %v451
        %v455 = vlaneseq
        %v456 = vshrl.u32 %v455, 7
        %v457 = vsub.s32 0, %v456
        %v458 = vrot.slane %v431, %v457
        %v460 = vadd.f32 %v453, %v458
        %v461 = vld [vmem:[#allocation8] sm:$0x1]
        %v463 = vlaneseq
        %v464 = vshrl.u32 %v463, 7
        %v465 = vsub.s32 0, %v464
        %v466 = vrot.slane %v461, %v465
        %v468 = vmul.f32 %v460, %v466
        %v469 = vld [vmem:[#allocation10] sm:$0x1]
        %v471 = vlaneseq
        %v472 = vshrl.u32 %v471, 7
        %v473 = vsub.s32 0, %v472
        %v474 = vrot.slane %v469, %v473
        %v476 = vadd.f32 %v468, %v474
        %v477 = vpack.c.bf16 %v476, %v476
        %v478 = vld [vmem:[#allocation11] sm:$0xf]
        %v479 = vld [vmem:[#allocation11 + $0x4] sm:$0xf]
        %v480 = vld [vmem:[#allocation11 + $0x8] sm:$0xf]
        %v481 = vld [vmem:[#allocation11 + $0xc] sm:$0xf]
        %v486 = vunpack.c.l.b16 %v478
        %v487 = vunpack.c.l.b16 %v479
        %v488 = vunpack.c.l.b16 %v480
        %v489 = vunpack.c.l.b16 %v481
        %v490 = vpack.c.b16 %v487, %v486
        %v491 = vpack.c.b16 %v489, %v488
        %v495 = vsel %vm432, %v477, 0
        %497 = vmatprep.subr.bf16.mxu0 0
        %498 = vmatpush1.bf16.msra.mxu0 %v490
        %499 = vmatprep.subr.bf16.mxu0 0
        %500 = vmatpush1.bf16.msra.mxu0 %v491
        %501 = vmatprep.subr.bf16.mxu0 0
        %502 = vmatpush1.bf16.msra.mxu0 0
        %503 = vmatprep.subr.bf16.mxu0 0
        %504 = vmatpush1.bf16.msra.mxu0 0
        %505 = vmatprep.subr.bf16.mxu0 0
        %506 = vmatpush1.bf16.msra.mxu0 0
        %507 = vmatprep.subr.bf16.mxu0 0
        %508 = vmatpush1.bf16.msra.mxu0 0
        %509 = vmatprep.subr.bf16.mxu0 0
        %510 = vmatpush1.bf16.msra.mxu0 0
        %511 = vmatprep.subr.bf16.mxu0 0
        %512 = vmatpush1.bf16.msra.mxu0 0
        %513 = vmatprep.subr.bf16.mxu0 0
        %514 = vmatpush1.bf16.msra.mxu0 0
        %515 = vmatprep.subr.bf16.mxu0 0
        %516 = vmatpush1.bf16.msra.mxu0 0
        %517 = vmatprep.subr.bf16.mxu0 0
        %518 = vmatpush1.bf16.msra.mxu0 0
        %519 = vmatprep.subr.bf16.mxu0 0
        %520 = vmatpush1.bf16.msra.mxu0 0
        %521 = vmatprep.subr.bf16.mxu0 0
        %522 = vmatpush1.bf16.msra.mxu0 0
        %523 = vmatprep.subr.bf16.mxu0 0
        %524 = vmatpush1.bf16.msra.mxu0 0
        %525 = vmatprep.subr.bf16.mxu0 0
        %526 = vmatpush1.bf16.msra.mxu0 0
        %527 = vmatprep.subr.bf16.mxu0 0
        %528 = vmatpush1.bf16.msra.mxu0 0
        %529 = vmatprep.mubr.bf16.mxu0 0
        %530 = vmatmul.mubr.bf16.gmra.mrb[0].mxu0 %v495
        %v531 = vpop.f32.mrb[0].mxu0
        %v532 = vadd.f32 0.0, %v531
        %v533 = vpop.f32.mrb[0].mxu0
        %v534 = vpop.f32.mrb[0].mxu0
        %v535 = vpop.f32.mrb[0].mxu0
        %536 = vdwg.mxu0
        %v537 = vld [vmem:[#allocation13] sm:$0x1]
        %v539 = vlaneseq
        %v540 = vshrl.u32 %v539, 7
        %v541 = vsub.s32 0, %v540
        %v542 = vrot.slane %v537, %v541
        %v544 = vmul.f32 %v532, %v542
        %v545 = vld [vmem:[#allocation14] sm:$0x1]
        %v547 = vlaneseq
        %v548 = vshrl.u32 %v547, 7
        %v549 = vsub.s32 0, %v548
        %v550 = vrot.slane %v545, %v549
        %v552 = vadd.f32 %v544, %v550
        %v553 = vpack.c.bf16 %v552, %v552
        %vm554 = vcmask 781312
        %555 = vst.msk [vmem:[%s427] sm:$0xf] %vm554, %v553
        %s556 = sand.u32 %s226, 1
        %s557 = scalar_lea.sflag [#allocation4], %s556
        %s558 = sand.u32 %s226, 1
        %s559 = smul.addr %s558, 4
        %s560 = scalar_lea.vmem [#allocation16], %s559
        // Predicated region
        $region85: #{tpu_custom_call.1} parent=51 // pred_check
          %p561 = pneg %p236
        $region86: #{tpu_custom_call.1} parent=51 // pred_check_branch
          %563 = sbr.rel (%p561) target = $region88
        $region87: #{tpu_custom_call.1} parent=51 // pred_region
          %s565 = ssub.s32 64, 64
          %566 = vsyncadd %s557, %s565
          %s567 = sadd.s32 %s34, %s33
          %s568 = smul.addr %s567, 64
          %s569 = scalar_lea.hbm %s8, %s568
          %s571 = sshll.u32 %s560, 4
          %s572 = int_to_ptr.vmem [resolvable:$true] %s571
          %574 = dma.vmem_to_hbm [thread:$0]  %s572, 64, %s569, %s557
        $region88: #{tpu_custom_call.1} parent=51 // pred_fallthru
          _
      $region52: #{tpu_custom_call.1} parent=5 // pred_fallthru
        _
      %p575 = scmp.le.s32.totalorder 2, %s24
      // Predicated region
      $region89: #{tpu_custom_call.1} parent=5 // pred_check
        %p576 = pneg %p575
      $region90: #{tpu_custom_call.1} parent=5 // pred_check_branch
        %578 = sbr.rel (%p576) target = $region92
      $region91: #{tpu_custom_call.1} parent=5 // pred_region
        %s579 = ssub.s32 %s24, 2
        // Predicated region
        $region93: #{tpu_custom_call.1} parent=91 // pred_check
          %p580 = pneg %p242
        $region94: #{tpu_custom_call.1} parent=91 // pred_check_branch
          %582 = sbr.rel (%p580) target = $region96
        $region95: #{tpu_custom_call.1} parent=91 // pred_region
          %s583 = sand.u32 %s227, 1
          %s584 = scalar_lea.sflag [#allocation4], %s583
          %s585 = sand.u32 %s227, 1
          %s586 = smul.addr %s585, 4
          %s587 = scalar_lea.vmem [#allocation16], %s586
          %588 = dma.done %s584, 64
        $region96: #{tpu_custom_call.1} parent=91 // pred_fallthru
          _
      $region92: #{tpu_custom_call.1} parent=5 // pred_fallthru
        _
    $region6: #{tpu_custom_call.1} parent=1 // loop_footer
      %s28 = sadd.s32 1, %s24
    $region7: #{tpu_custom_call.1} parent=1 // loop_footer_branch
      %23 = sbr.rel target = $region3
    $region8: #{tpu_custom_call.1} parent=1 // loop_exit
      _
    %589 = vsyncpa [#allocation3], 1
    %s590 = scalar_lea.sflag [#allocation3], 1
    %591 = vsyncpa %s590, 1
    %592 = vsyncpa [#allocation6], 1
    %593 = vsyncpa [#allocation9], 1
    %594 = vsyncpa [#allocation12], 1
    %595 = vsyncpa [#allocation15], 1
    %596 = vsyncpa [#allocation4], 1
    %s597 = scalar_lea.sflag [#allocation4], 1
    %598 = vsyncpa %s597, 1

</llo_original>
